<compile_context>
chip_gen: v5e
topology: v5e:2x2
jax: 0.10.0
libtpu: 0.0.40
codegen_flags: <defaults>
</compile_context>

<pallas_src>
import jax
import jax.numpy as jnp
import numpy as np
from jax.experimental import pallas as pl
from jax.experimental.pallas import tpu as pltpu

# ---- hyperparameters (small, consistent with the module structure) ----
B = 2        # batch
S = 8        # seq_len
D_MODEL = 32
N_HEADS = 4
D_K = 8
D_V = 8
D_FF = 64
LN_EPS = 1e-5

HDK = N_HEADS * D_K     # 32
HDV = N_HEADS * D_V     # 32

# ---- static column offsets inside the packed weight slabs ----
# row-weight slab (D_MODEL rows): [ Wqkv (96) | Wo (32) | W1 (64) ]  -> (32, 192)
_QKV_W = 3 * HDK                              # 96
_WO_0, _WO_1 = _QKV_W, _QKV_W + D_MODEL       # 96 .. 128
_W1_0, _W1_1 = _WO_1, _WO_1 + D_FF            # 128 .. 192
WROW_LEN = _W1_1

# vector slab (1 row): [ bqkv(96) | bo(32) | g1(32) | be1(32) | bc1(64) | bc2(32) | g2(32) | be2(32) ]
_BQKV_0, _BQKV_1 = 0, 3 * HDK
_BO_0, _BO_1 = _BQKV_1, _BQKV_1 + D_MODEL
_G1_0, _G1_1 = _BO_1, _BO_1 + D_MODEL
_BE1_0, _BE1_1 = _G1_1, _G1_1 + D_MODEL
_BC1_0, _BC1_1 = _BE1_1, _BE1_1 + D_FF
_BC2_0, _BC2_1 = _BC1_1, _BC1_1 + D_MODEL
_G2_0, _G2_1 = _BC2_1, _BC2_1 + D_MODEL
_BE2_0, _BE2_1 = _G2_1, _G2_1 + D_MODEL
VEC_LEN = _BE2_1


def _layernorm(x, gamma, beta):
    mean = jnp.mean(x, axis=-1, keepdims=True)
    var = jnp.mean((x - mean) ** 2, axis=-1, keepdims=True)
    return (x - mean) * jax.lax.rsqrt(var + LN_EPS) * gamma + beta


def encoder_layer_kernel(x_ref, maskb_ref, wrow_ref, w2_ref, vec_ref,
                         out_ref, attn_ref):
    x = x_ref[...]                                   # (B*S, D)

    # ---- static slices of the packed slabs (free, no data-dependent indexing) ----
    wqkv = wrow_ref[:, 0:_QKV_W]                     # (D, 3*H*d_k), Q part pre-scaled
    wo = wrow_ref[:, _WO_0:_WO_1]                    # (H*d_v, D)
    w1 = wrow_ref[:, _W1_0:_W1_1]                    # (D, D_FF)
    w2 = w2_ref[...]                                 # (D_FF, D)

    bqkv = vec_ref[:, _BQKV_0:_BQKV_1]
    bo = vec_ref[:, _BO_0:_BO_1]
    g1 = vec_ref[:, _G1_0:_G1_1]
    be1 = vec_ref[:, _BE1_0:_BE1_1]
    bc1 = vec_ref[:, _BC1_0:_BC1_1]
    bc2 = vec_ref[:, _BC2_0:_BC2_1]
    g2 = vec_ref[:, _G2_0:_G2_1]
    be2 = vec_ref[:, _BE2_0:_BE2_1]

    # ---- fused QKV projection (one MXU push instead of three) ----
    qkv = jnp.dot(x, wqkv, preferred_element_type=jnp.float32) + bqkv   # (B*S, 96)

    # ---- attention: static unrolled loops over batch and heads, lane slices only ----
    ctx_rows, attn_rows = [], []
    for b in range(B):
        r0 = b * S
        mask_b = maskb_ref[r0:r0 + S, :]             # (S, S) additive bias (0 / -1e9)
        qkv_b = qkv[r0:r0 + S, :]                    # (S, 96)
        ctx_heads, attn_heads = [], []
        for h in range(N_HEADS):
            q_h = qkv_b[:, h * D_K:(h + 1) * D_K]                          # (S, d_k)
            k_h = qkv_b[:, HDK + h * D_K:HDK + (h + 1) * D_K]              # (S, d_k)
            v_h = qkv_b[:, 2 * HDK + h * D_V:2 * HDK + (h + 1) * D_V]      # (S, d_v)
            # scores = q @ k^T (scaling already folded into Wq/bq on host)
            s = jax.lax.dot_general(q_h, k_h, (((1,), (1,)), ((), ())),
                                    preferred_element_type=jnp.float32)    # (S, S)
            s = s + mask_b
            m = jnp.max(s, axis=-1, keepdims=True)
            p = jnp.exp(s - m)
            inv = pl.reciprocal(jnp.sum(p, axis=-1, keepdims=True), approx=False)
            a = p * inv                                                    # (S, S)
            attn_heads.append(a)
            ctx_heads.append(jnp.dot(a, v_h, preferred_element_type=jnp.float32))
        ctx_rows.append(jnp.concatenate(ctx_heads, axis=-1))    # (S, H*d_v)
        attn_rows.append(jnp.concatenate(attn_heads, axis=-1))  # (S, H*S)

    context = jnp.concatenate(ctx_rows, axis=0)                 # (B*S, H*d_v)
    attn_all = jnp.concatenate(attn_rows, axis=0)               # (B*S, H*S)

    # ---- output projection + residual + LayerNorm ----
    attn_out = jnp.dot(context, wo, preferred_element_type=jnp.float32) + bo
    h1 = _layernorm(attn_out + x, g1, be1)                      # (B*S, D)

    # ---- position-wise FFN (1x1 convs == per-position linears) ----
    f = jnp.maximum(jnp.dot(h1, w1, preferred_element_type=jnp.float32) + bc1, 0.0)
    f = jnp.dot(f, w2, preferred_element_type=jnp.float32) + bc2
    out = _layernorm(f + h1, g2, be2)

    out_ref[...] = out.astype(out_ref.dtype)
    attn_ref[...] = attn_all.astype(attn_ref.dtype)


def pack_params(params):
    """Fold scaling into Wq/bq and pack the 16 small arrays into 3 slabs."""
    (wq, bq, wk, bk, wv, bv, wo, bo, g1, be1, w1, bc1, w2, bc2, g2, be2) = params
    scale = jnp.float32(1.0 / np.sqrt(D_K))
    wqkv = jnp.concatenate([wq * scale, wk, wv], axis=1)        # (D, 96)
    bqkv = jnp.concatenate([bq * scale, bk, bv], axis=1)        # (1, 96)
    wrow = jnp.concatenate([wqkv, wo, w1], axis=1)              # (D, 192)
    vecs = jnp.concatenate([bqkv, bo, g1, be1, bc1, bc2, g2, be2], axis=1)  # (1, 352)
    assert wrow.shape == (D_MODEL, WROW_LEN)
    assert vecs.shape == (1, VEC_LEN)
    return wrow, w2, vecs


def encoder_layer(x, mask_bool, params):
    """x: (B, S, D) f32; mask_bool: (B, S, S) bool (True == masked)."""
    wrow, w2, vecs = pack_params(params)
    x2d = x.reshape(B * S, D_MODEL)
    mask_bias = (mask_bool.astype(jnp.float32) * jnp.float32(-1e9)).reshape(B * S, S)

    def full(shape):
        return pl.BlockSpec(shape, lambda i: (0,) * len(shape))

    out2d, attn2d = pl.pallas_call(
        encoder_layer_kernel,
        out_shape=(
            jax.ShapeDtypeStruct((B * S, D_MODEL), jnp.float32),
            jax.ShapeDtypeStruct((B * S, N_HEADS * S), jnp.float32),
        ),
        grid_spec=pltpu.PrefetchScalarGridSpec(
            num_scalar_prefetch=0,
            grid=(1,),                                 # single invocation: no per-step overhead
            in_specs=[
                full((B * S, D_MODEL)),                # x (flattened batch)
                full((B * S, S)),                      # additive mask bias
                full((D_MODEL, WROW_LEN)),             # packed row-weight slab
                full((D_FF, D_MODEL)),                 # w2
                full((1, VEC_LEN)),                    # packed bias/LN vector slab
            ],
            out_specs=[
                full((B * S, D_MODEL)),
                full((B * S, N_HEADS * S)),
            ],
        ),
        compiler_params=pltpu.CompilerParams(
            dimension_semantics=("arbitrary",)),
    )(x2d, mask_bias, wrow, w2, vecs)

    out = out2d.reshape(B, S, D_MODEL)
    # attn2d layout: [b*S + q, h*S + k]  ->  (B, H, S, S)
    attn = attn2d.reshape(B, S, N_HEADS, S).transpose(0, 2, 1, 3)
    return out, attn


def reference(x, mask_b, params):
    """Pure-JAX reference mirroring the PyTorch forward (unpacked params)."""
    (wq, bq, wk, bk, wv, bv, wo, bo, g1, be1, w1, bc1, w2, bc2, g2, be2) = params

    def ln(h, g, b):
        mu = jnp.mean(h, -1, keepdims=True)
        var = jnp.mean((h - mu) ** 2, -1, keepdims=True)
        return (h - mu) / jnp.sqrt(var + LN_EPS) * g + b

    q = (x @ wq + bq).reshape(B, S, N_HEADS, D_K).transpose(0, 2, 1, 3)
    k = (x @ wk + bk).reshape(B, S, N_HEADS, D_K).transpose(0, 2, 1, 3)
    v = (x @ wv + bv).reshape(B, S, N_HEADS, D_V).transpose(0, 2, 1, 3)
    scores = jnp.einsum('bhqd,bhkd->bhqk', q, k) / np.sqrt(D_K)
    scores = jnp.where(mask_b[:, None, :, :], -1e9, scores)
    attn = jax.nn.softmax(scores, axis=-1)
    ctx = jnp.einsum('bhqk,bhkd->bhqd', attn, v).transpose(0, 2, 1, 3)
    ctx = ctx.reshape(B, S, N_HEADS * D_V)
    h1 = ln(ctx @ wo + bo + x, g1, be1)
    f = jax.nn.relu(h1 @ w1 + bc1)
    out = ln(f @ w2 + bc2 + h1, g2, be2)
    return out, attn


def init_params(key):
    ks = jax.random.split(key, 8)
    f32 = jnp.float32
    wq = jax.random.normal(ks[0], (D_MODEL, N_HEADS * D_K), f32) * 0.05
    wk = jax.random.normal(ks[1], (D_MODEL, N_HEADS * D_K), f32) * 0.05
    wv = jax.random.normal(ks[2], (D_MODEL, N_HEADS * D_V), f32) * 0.05
    wo = jax.random.normal(ks[3], (N_HEADS * D_V, D_MODEL), f32) * 0.05
    bq = jax.random.normal(ks[4], (1, N_HEADS * D_K), f32) * 0.02
    bk = jax.random.normal(ks[5], (1, N_HEADS * D_K), f32) * 0.02
    bv = jax.random.normal(ks[6], (1, N_HEADS * D_V), f32) * 0.02
    bo = jnp.zeros((1, D_MODEL), f32)
    # FFN: conv1(d_model->d_ff, k=1) and conv2(d_ff->d_model, k=1) folded to matrices
    k2 = jax.random.split(ks[7], 4)
    w1 = jax.random.normal(k2[0], (D_MODEL, D_FF), f32) * 0.05
    bc1 = jax.random.normal(k2[1], (1, D_FF), f32) * 0.02
    w2 = jax.random.normal(k2[2], (D_FF, D_MODEL), f32) * 0.05
    bc2 = jax.random.normal(k2[3], (1, D_MODEL), f32) * 0.02
    # LayerNorm params (PyTorch default init: gamma=1, beta=0)
    g1 = jnp.ones((1, D_MODEL), f32)
    be1 = jnp.zeros((1, D_MODEL), f32)
    g2 = jnp.ones((1, D_MODEL), f32)
    be2 = jnp.zeros((1, D_MODEL), f32)
    return (wq, bq, wk, bk, wv, bv, wo, bo, g1, be1, w1, bc1, w2, bc2, g2, be2)


if __name__ == "__main__":
    key = jax.random.PRNGKey(0)
    kx, kp = jax.random.split(key)

    x = jax.random.normal(kx, (B, S, D_MODEL), jnp.float32)
    # mask: True == masked (as in PyTorch masked_fill_). Mask out last 2 key positions.
    mask_bool = jnp.zeros((B, S, S), dtype=bool).at[:, :, -2:].set(True)

    params = init_params(kp)

    out, attn = encoder_layer(x, mask_bool, params)
    out = jax.block_until_ready(out)
    attn = jax.block_until_ready(attn)

    out_ref, attn_ref = reference(x, mask_bool, params)
    np.testing.assert_allclose(np.asarray(out), np.asarray(out_ref), atol=1e-4, rtol=1e-4)
    np.testing.assert_allclose(np.asarray(attn), np.asarray(attn_ref), atol=1e-5, rtol=1e-4)

    print("KERNEL_OK")
</pallas_src>

<mosaic_0001>
module attributes {stable_mosaic.version = 11 : i64} {
  func.func @encoder_layer_kernel(%arg0: i32, %arg1: memref<16x32xf32, #tpu.memory_space<vmem>>, %arg2: memref<16x8xf32, #tpu.memory_space<vmem>>, %arg3: memref<32x192xf32, #tpu.memory_space<vmem>>, %arg4: memref<64x32xf32, #tpu.memory_space<vmem>>, %arg5: memref<1x352xf32, #tpu.memory_space<vmem>>, %arg6: memref<16x32xf32, #tpu.memory_space<vmem>>, %arg7: memref<16x32xf32, #tpu.memory_space<vmem>>) attributes {dimension_semantics = [#tpu.dimension_semantics<arbitrary>], iteration_bounds = array<i64: 1>, scalar_prefetch = 0 : i64, scratch_operands = 0 : i64, tpu.core_type = #tpu.core_type<tc>, window_params = [{pipeline_mode = #tpu.pipeline_mode<synchronous>, transform_indices = @transform_0, window_bounds = array<i64: 16, 32>}, {pipeline_mode = #tpu.pipeline_mode<synchronous>, transform_indices = @transform_1, window_bounds = array<i64: 16, 8>}, {pipeline_mode = #tpu.pipeline_mode<synchronous>, transform_indices = @transform_2, window_bounds = array<i64: 32, 192>}, {pipeline_mode = #tpu.pipeline_mode<synchronous>, transform_indices = @transform_3, window_bounds = array<i64: 64, 32>}, {pipeline_mode = #tpu.pipeline_mode<synchronous>, transform_indices = @transform_4, window_bounds = array<i64: 1, 352>}, {pipeline_mode = #tpu.pipeline_mode<synchronous>, transform_indices = @transform_5, window_bounds = array<i64: 16, 32>}, {pipeline_mode = #tpu.pipeline_mode<synchronous>, transform_indices = @transform_6, window_bounds = array<i64: 16, 32>}]} {
    %c0 = arith.constant 0 : index
    %c0_0 = arith.constant 0 : index
    %0 = vector.load %arg1[%c0, %c0_0] : memref<16x32xf32, #tpu.memory_space<vmem>>, vector<16x32xf32>
    %c0_1 = arith.constant 0 : index
    %c0_2 = arith.constant 0 : index
    %1 = vector.load %arg3[%c0_1, %c0_2] : memref<32x192xf32, #tpu.memory_space<vmem>>, vector<32x96xf32>
    %c0_3 = arith.constant 0 : index
    %c96 = arith.constant 96 : index
    %2 = vector.load %arg3[%c0_3, %c96] : memref<32x192xf32, #tpu.memory_space<vmem>>, vector<32x32xf32>
    %c0_4 = arith.constant 0 : index
    %c128 = arith.constant 128 : index
    %3 = vector.load %arg3[%c0_4, %c128] : memref<32x192xf32, #tpu.memory_space<vmem>>, vector<32x64xf32>
    %c0_5 = arith.constant 0 : index
    %c0_6 = arith.constant 0 : index
    %4 = vector.load %arg4[%c0_5, %c0_6] : memref<64x32xf32, #tpu.memory_space<vmem>>, vector<64x32xf32>
    %c0_7 = arith.constant 0 : index
    %c0_8 = arith.constant 0 : index
    %5 = vector.load %arg5[%c0_7, %c0_8] : memref<1x352xf32, #tpu.memory_space<vmem>>, vector<1x96xf32>
    %c0_9 = arith.constant 0 : index
    %c96_10 = arith.constant 96 : index
    %6 = vector.load %arg5[%c0_9, %c96_10] : memref<1x352xf32, #tpu.memory_space<vmem>>, vector<1x32xf32>
    %c0_11 = arith.constant 0 : index
    %c128_12 = arith.constant 128 : index
    %7 = vector.load %arg5[%c0_11, %c128_12] : memref<1x352xf32, #tpu.memory_space<vmem>>, vector<1x32xf32>
    %c0_13 = arith.constant 0 : index
    %c160 = arith.constant 160 : index
    %8 = vector.load %arg5[%c0_13, %c160] : memref<1x352xf32, #tpu.memory_space<vmem>>, vector<1x32xf32>
    %c0_14 = arith.constant 0 : index
    %c192 = arith.constant 192 : index
    %9 = vector.load %arg5[%c0_14, %c192] : memref<1x352xf32, #tpu.memory_space<vmem>>, vector<1x64xf32>
    %c0_15 = arith.constant 0 : index
    %c256 = arith.constant 256 : index
    %10 = vector.load %arg5[%c0_15, %c256] : memref<1x352xf32, #tpu.memory_space<vmem>>, vector<1x32xf32>
    %c0_16 = arith.constant 0 : index
    %c288 = arith.constant 288 : index
    %11 = vector.load %arg5[%c0_16, %c288] : memref<1x352xf32, #tpu.memory_space<vmem>>, vector<1x32xf32>
    %c0_17 = arith.constant 0 : index
    %c320 = arith.constant 320 : index
    %12 = vector.load %arg5[%c0_17, %c320] : memref<1x352xf32, #tpu.memory_space<vmem>>, vector<1x32xf32>
    %cst = arith.constant dense<0.000000e+00> : vector<16x96xf32>
    %13 = tpu.matmul %0, %1, %cst {dimension_numbers = #tpu.dot_dimension_numbers<[1], [0], [0], [1], [0, 0, 1, 1], [], []>} : vector<16x32xf32>, vector<32x96xf32>, vector<16x96xf32> -> vector<16x96xf32>
    %14 = vector.broadcast %5 : vector<1x96xf32> to vector<16x96xf32>
    %15 = arith.addf %13, %14 : vector<16x96xf32>
    %c0_18 = arith.constant 0 : index
    %c0_19 = arith.constant 0 : index
    %16 = vector.load %arg2[%c0_18, %c0_19] : memref<16x8xf32, #tpu.memory_space<vmem>>, vector<8x8xf32>
    %17 = vector.extract_strided_slice %15 {offsets = [0, 0], sizes = [8, 96], strides = [1, 1]} : vector<16x96xf32> to vector<8x96xf32>
    %18 = vector.extract_strided_slice %17 {offsets = [0, 0], sizes = [8, 8], strides = [1, 1]} : vector<8x96xf32> to vector<8x8xf32>
    %19 = vector.extract_strided_slice %17 {offsets = [0, 32], sizes = [8, 8], strides = [1, 1]} : vector<8x96xf32> to vector<8x8xf32>
    %20 = vector.extract_strided_slice %17 {offsets = [0, 64], sizes = [8, 8], strides = [1, 1]} : vector<8x96xf32> to vector<8x8xf32>
    %cst_20 = arith.constant dense<0.000000e+00> : vector<8x8xf32>
    %21 = tpu.matmul %18, %19, %cst_20 {dimension_numbers = #tpu.dot_dimension_numbers<[1], [1], [0], [0], [0, 0, 1, 0], [], []>} : vector<8x8xf32>, vector<8x8xf32>, vector<8x8xf32> -> vector<8x8xf32>
    %22 = arith.addf %21, %16 : vector<8x8xf32>
    %cst_21 = arith.constant dense<0xFF800000> : vector<8xf32>
    %23 = vector.multi_reduction <maximumf>, %22, %cst_21 [1] : vector<8x8xf32> to vector<8xf32>
    %24 = vector.shape_cast %23 : vector<8xf32> to vector<8x1xf32>
    %25 = vector.broadcast %24 : vector<8x1xf32> to vector<8x8xf32>
    %26 = arith.subf %22, %25 : vector<8x8xf32>
    %27 = math.exp %26 : vector<8x8xf32>
    %cst_22 = arith.constant dense<0.000000e+00> : vector<8xf32>
    %28 = vector.multi_reduction <add>, %27, %cst_22 [1] : vector<8x8xf32> to vector<8xf32>
    %29 = vector.shape_cast %28 : vector<8xf32> to vector<8x1xf32>
    %30 = tpu.reciprocal %29 : vector<8x1xf32> -> vector<8x1xf32>
    %31 = vector.broadcast %30 : vector<8x1xf32> to vector<8x8xf32>
    %32 = arith.mulf %27, %31 : vector<8x8xf32>
    %cst_23 = arith.constant dense<0.000000e+00> : vector<8x8xf32>
    %33 = tpu.matmul %32, %20, %cst_23 {dimension_numbers = #tpu.dot_dimension_numbers<[1], [0], [0], [1], [0, 0, 1, 1], [], []>} : vector<8x8xf32>, vector<8x8xf32>, vector<8x8xf32> -> vector<8x8xf32>
    %34 = vector.extract_strided_slice %17 {offsets = [0, 8], sizes = [8, 8], strides = [1, 1]} : vector<8x96xf32> to vector<8x8xf32>
    %35 = vector.extract_strided_slice %17 {offsets = [0, 40], sizes = [8, 8], strides = [1, 1]} : vector<8x96xf32> to vector<8x8xf32>
    %36 = vector.extract_strided_slice %17 {offsets = [0, 72], sizes = [8, 8], strides = [1, 1]} : vector<8x96xf32> to vector<8x8xf32>
    %cst_24 = arith.constant dense<0.000000e+00> : vector<8x8xf32>
    %37 = tpu.matmul %34, %35, %cst_24 {dimension_numbers = #tpu.dot_dimension_numbers<[1], [1], [0], [0], [0, 0, 1, 0], [], []>} : vector<8x8xf32>, vector<8x8xf32>, vector<8x8xf32> -> vector<8x8xf32>
    %38 = arith.addf %37, %16 : vector<8x8xf32>
    %cst_25 = arith.constant dense<0xFF800000> : vector<8xf32>
    %39 = vector.multi_reduction <maximumf>, %38, %cst_25 [1] : vector<8x8xf32> to vector<8xf32>
    %40 = vector.shape_cast %39 : vector<8xf32> to vector<8x1xf32>
    %41 = vector.broadcast %40 : vector<8x1xf32> to vector<8x8xf32>
    %42 = arith.subf %38, %41 : vector<8x8xf32>
    %43 = math.exp %42 : vector<8x8xf32>
    %cst_26 = arith.constant dense<0.000000e+00> : vector<8xf32>
    %44 = vector.multi_reduction <add>, %43, %cst_26 [1] : vector<8x8xf32> to vector<8xf32>
    %45 = vector.shape_cast %44 : vector<8xf32> to vector<8x1xf32>
    %46 = tpu.reciprocal %45 : vector<8x1xf32> -> vector<8x1xf32>
    %47 = vector.broadcast %46 : vector<8x1xf32> to vector<8x8xf32>
    %48 = arith.mulf %43, %47 : vector<8x8xf32>
    %cst_27 = arith.constant dense<0.000000e+00> : vector<8x8xf32>
    %49 = tpu.matmul %48, %36, %cst_27 {dimension_numbers = #tpu.dot_dimension_numbers<[1], [0], [0], [1], [0, 0, 1, 1], [], []>} : vector<8x8xf32>, vector<8x8xf32>, vector<8x8xf32> -> vector<8x8xf32>
    %50 = vector.extract_strided_slice %17 {offsets = [0, 16], sizes = [8, 8], strides = [1, 1]} : vector<8x96xf32> to vector<8x8xf32>
    %51 = vector.extract_strided_slice %17 {offsets = [0, 48], sizes = [8, 8], strides = [1, 1]} : vector<8x96xf32> to vector<8x8xf32>
    %52 = vector.extract_strided_slice %17 {offsets = [0, 80], sizes = [8, 8], strides = [1, 1]} : vector<8x96xf32> to vector<8x8xf32>
    %cst_28 = arith.constant dense<0.000000e+00> : vector<8x8xf32>
    %53 = tpu.matmul %50, %51, %cst_28 {dimension_numbers = #tpu.dot_dimension_numbers<[1], [1], [0], [0], [0, 0, 1, 0], [], []>} : vector<8x8xf32>, vector<8x8xf32>, vector<8x8xf32> -> vector<8x8xf32>
    %54 = arith.addf %53, %16 : vector<8x8xf32>
    %cst_29 = arith.constant dense<0xFF800000> : vector<8xf32>
    %55 = vector.multi_reduction <maximumf>, %54, %cst_29 [1] : vector<8x8xf32> to vector<8xf32>
    %56 = vector.shape_cast %55 : vector<8xf32> to vector<8x1xf32>
    %57 = vector.broadcast %56 : vector<8x1xf32> to vector<8x8xf32>
    %58 = arith.subf %54, %57 : vector<8x8xf32>
    %59 = math.exp %58 : vector<8x8xf32>
    %cst_30 = arith.constant dense<0.000000e+00> : vector<8xf32>
    %60 = vector.multi_reduction <add>, %59, %cst_30 [1] : vector<8x8xf32> to vector<8xf32>
    %61 = vector.shape_cast %60 : vector<8xf32> to vector<8x1xf32>
    %62 = tpu.reciprocal %61 : vector<8x1xf32> -> vector<8x1xf32>
    %63 = vector.broadcast %62 : vector<8x1xf32> to vector<8x8xf32>
    %64 = arith.mulf %59, %63 : vector<8x8xf32>
    %cst_31 = arith.constant dense<0.000000e+00> : vector<8x8xf32>
    %65 = tpu.matmul %64, %52, %cst_31 {dimension_numbers = #tpu.dot_dimension_numbers<[1], [0], [0], [1], [0, 0, 1, 1], [], []>} : vector<8x8xf32>, vector<8x8xf32>, vector<8x8xf32> -> vector<8x8xf32>
    %66 = vector.extract_strided_slice %17 {offsets = [0, 24], sizes = [8, 8], strides = [1, 1]} : vector<8x96xf32> to vector<8x8xf32>
    %67 = vector.extract_strided_slice %17 {offsets = [0, 56], sizes = [8, 8], strides = [1, 1]} : vector<8x96xf32> to vector<8x8xf32>
    %68 = vector.extract_strided_slice %17 {offsets = [0, 88], sizes = [8, 8], strides = [1, 1]} : vector<8x96xf32> to vector<8x8xf32>
    %cst_32 = arith.constant dense<0.000000e+00> : vector<8x8xf32>
    %69 = tpu.matmul %66, %67, %cst_32 {dimension_numbers = #tpu.dot_dimension_numbers<[1], [1], [0], [0], [0, 0, 1, 0], [], []>} : vector<8x8xf32>, vector<8x8xf32>, vector<8x8xf32> -> vector<8x8xf32>
    %70 = arith.addf %69, %16 : vector<8x8xf32>
    %cst_33 = arith.constant dense<0xFF800000> : vector<8xf32>
    %71 = vector.multi_reduction <maximumf>, %70, %cst_33 [1] : vector<8x8xf32> to vector<8xf32>
    %72 = vector.shape_cast %71 : vector<8xf32> to vector<8x1xf32>
    %73 = vector.broadcast %72 : vector<8x1xf32> to vector<8x8xf32>
    %74 = arith.subf %70, %73 : vector<8x8xf32>
    %75 = math.exp %74 : vector<8x8xf32>
    %cst_34 = arith.constant dense<0.000000e+00> : vector<8xf32>
    %76 = vector.multi_reduction <add>, %75, %cst_34 [1] : vector<8x8xf32> to vector<8xf32>
    %77 = vector.shape_cast %76 : vector<8xf32> to vector<8x1xf32>
    %78 = tpu.reciprocal %77 : vector<8x1xf32> -> vector<8x1xf32>
    %79 = vector.broadcast %78 : vector<8x1xf32> to vector<8x8xf32>
    %80 = arith.mulf %75, %79 : vector<8x8xf32>
    %cst_35 = arith.constant dense<0.000000e+00> : vector<8x8xf32>
    %81 = tpu.matmul %80, %68, %cst_35 {dimension_numbers = #tpu.dot_dimension_numbers<[1], [0], [0], [1], [0, 0, 1, 1], [], []>} : vector<8x8xf32>, vector<8x8xf32>, vector<8x8xf32> -> vector<8x8xf32>
    %82 = tpu.concatenate %33, %49, %65, %81 in 1 : vector<8x8xf32>, vector<8x8xf32>, vector<8x8xf32>, vector<8x8xf32> -> vector<8x32xf32>
    %83 = tpu.concatenate %32, %48, %64, %80 in 1 : vector<8x8xf32>, vector<8x8xf32>, vector<8x8xf32>, vector<8x8xf32> -> vector<8x32xf32>
    %c8 = arith.constant 8 : index
    %c0_36 = arith.constant 0 : index
    %84 = vector.load %arg2[%c8, %c0_36] : memref<16x8xf32, #tpu.memory_space<vmem>>, vector<8x8xf32>
    %85 = vector.extract_strided_slice %15 {offsets = [8, 0], sizes = [8, 96], strides = [1, 1]} : vector<16x96xf32> to vector<8x96xf32>
    %86 = vector.extract_strided_slice %85 {offsets = [0, 0], sizes = [8, 8], strides = [1, 1]} : vector<8x96xf32> to vector<8x8xf32>
    %87 = vector.extract_strided_slice %85 {offsets = [0, 32], sizes = [8, 8], strides = [1, 1]} : vector<8x96xf32> to vector<8x8xf32>
    %88 = vector.extract_strided_slice %85 {offsets = [0, 64], sizes = [8, 8], strides = [1, 1]} : vector<8x96xf32> to vector<8x8xf32>
    %cst_37 = arith.constant dense<0.000000e+00> : vector<8x8xf32>
    %89 = tpu.matmul %86, %87, %cst_37 {dimension_numbers = #tpu.dot_dimension_numbers<[1], [1], [0], [0], [0, 0, 1, 0], [], []>} : vector<8x8xf32>, vector<8x8xf32>, vector<8x8xf32> -> vector<8x8xf32>
    %90 = arith.addf %89, %84 : vector<8x8xf32>
    %cst_38 = arith.constant dense<0xFF800000> : vector<8xf32>
    %91 = vector.multi_reduction <maximumf>, %90, %cst_38 [1] : vector<8x8xf32> to vector<8xf32>
    %92 = vector.shape_cast %91 : vector<8xf32> to vector<8x1xf32>
    %93 = vector.broadcast %92 : vector<8x1xf32> to vector<8x8xf32>
    %94 = arith.subf %90, %93 : vector<8x8xf32>
    %95 = math.exp %94 : vector<8x8xf32>
    %cst_39 = arith.constant dense<0.000000e+00> : vector<8xf32>
    %96 = vector.multi_reduction <add>, %95, %cst_39 [1] : vector<8x8xf32> to vector<8xf32>
    %97 = vector.shape_cast %96 : vector<8xf32> to vector<8x1xf32>
    %98 = tpu.reciprocal %97 : vector<8x1xf32> -> vector<8x1xf32>
    %99 = vector.broadcast %98 : vector<8x1xf32> to vector<8x8xf32>
    %100 = arith.mulf %95, %99 : vector<8x8xf32>
    %cst_40 = arith.constant dense<0.000000e+00> : vector<8x8xf32>
    %101 = tpu.matmul %100, %88, %cst_40 {dimension_numbers = #tpu.dot_dimension_numbers<[1], [0], [0], [1], [0, 0, 1, 1], [], []>} : vector<8x8xf32>, vector<8x8xf32>, vector<8x8xf32> -> vector<8x8xf32>
    %102 = vector.extract_strided_slice %85 {offsets = [0, 8], sizes = [8, 8], strides = [1, 1]} : vector<8x96xf32> to vector<8x8xf32>
    %103 = vector.extract_strided_slice %85 {offsets = [0, 40], sizes = [8, 8], strides = [1, 1]} : vector<8x96xf32> to vector<8x8xf32>
    %104 = vector.extract_strided_slice %85 {offsets = [0, 72], sizes = [8, 8], strides = [1, 1]} : vector<8x96xf32> to vector<8x8xf32>
    %cst_41 = arith.constant dense<0.000000e+00> : vector<8x8xf32>
    %105 = tpu.matmul %102, %103, %cst_41 {dimension_numbers = #tpu.dot_dimension_numbers<[1], [1], [0], [0], [0, 0, 1, 0], [], []>} : vector<8x8xf32>, vector<8x8xf32>, vector<8x8xf32> -> vector<8x8xf32>
    %106 = arith.addf %105, %84 : vector<8x8xf32>
    %cst_42 = arith.constant dense<0xFF800000> : vector<8xf32>
    %107 = vector.multi_reduction <maximumf>, %106, %cst_42 [1] : vector<8x8xf32> to vector<8xf32>
    %108 = vector.shape_cast %107 : vector<8xf32> to vector<8x1xf32>
    %109 = vector.broadcast %108 : vector<8x1xf32> to vector<8x8xf32>
    %110 = arith.subf %106, %109 : vector<8x8xf32>
    %111 = math.exp %110 : vector<8x8xf32>
    %cst_43 = arith.constant dense<0.000000e+00> : vector<8xf32>
    %112 = vector.multi_reduction <add>, %111, %cst_43 [1] : vector<8x8xf32> to vector<8xf32>
    %113 = vector.shape_cast %112 : vector<8xf32> to vector<8x1xf32>
    %114 = tpu.reciprocal %113 : vector<8x1xf32> -> vector<8x1xf32>
    %115 = vector.broadcast %114 : vector<8x1xf32> to vector<8x8xf32>
    %116 = arith.mulf %111, %115 : vector<8x8xf32>
    %cst_44 = arith.constant dense<0.000000e+00> : vector<8x8xf32>
    %117 = tpu.matmul %116, %104, %cst_44 {dimension_numbers = #tpu.dot_dimension_numbers<[1], [0], [0], [1], [0, 0, 1, 1], [], []>} : vector<8x8xf32>, vector<8x8xf32>, vector<8x8xf32> -> vector<8x8xf32>
    %118 = vector.extract_strided_slice %85 {offsets = [0, 16], sizes = [8, 8], strides = [1, 1]} : vector<8x96xf32> to vector<8x8xf32>
    %119 = vector.extract_strided_slice %85 {offsets = [0, 48], sizes = [8, 8], strides = [1, 1]} : vector<8x96xf32> to vector<8x8xf32>
    %120 = vector.extract_strided_slice %85 {offsets = [0, 80], sizes = [8, 8], strides = [1, 1]} : vector<8x96xf32> to vector<8x8xf32>
    %cst_45 = arith.constant dense<0.000000e+00> : vector<8x8xf32>
    %121 = tpu.matmul %118, %119, %cst_45 {dimension_numbers = #tpu.dot_dimension_numbers<[1], [1], [0], [0], [0, 0, 1, 0], [], []>} : vector<8x8xf32>, vector<8x8xf32>, vector<8x8xf32> -> vector<8x8xf32>
    %122 = arith.addf %121, %84 : vector<8x8xf32>
    %cst_46 = arith.constant dense<0xFF800000> : vector<8xf32>
    %123 = vector.multi_reduction <maximumf>, %122, %cst_46 [1] : vector<8x8xf32> to vector<8xf32>
    %124 = vector.shape_cast %123 : vector<8xf32> to vector<8x1xf32>
    %125 = vector.broadcast %124 : vector<8x1xf32> to vector<8x8xf32>
    %126 = arith.subf %122, %125 : vector<8x8xf32>
    %127 = math.exp %126 : vector<8x8xf32>
    %cst_47 = arith.constant dense<0.000000e+00> : vector<8xf32>
    %128 = vector.multi_reduction <add>, %127, %cst_47 [1] : vector<8x8xf32> to vector<8xf32>
    %129 = vector.shape_cast %128 : vector<8xf32> to vector<8x1xf32>
    %130 = tpu.reciprocal %129 : vector<8x1xf32> -> vector<8x1xf32>
    %131 = vector.broadcast %130 : vector<8x1xf32> to vector<8x8xf32>
    %132 = arith.mulf %127, %131 : vector<8x8xf32>
    %cst_48 = arith.constant dense<0.000000e+00> : vector<8x8xf32>
    %133 = tpu.matmul %132, %120, %cst_48 {dimension_numbers = #tpu.dot_dimension_numbers<[1], [0], [0], [1], [0, 0, 1, 1], [], []>} : vector<8x8xf32>, vector<8x8xf32>, vector<8x8xf32> -> vector<8x8xf32>
    %134 = vector.extract_strided_slice %85 {offsets = [0, 24], sizes = [8, 8], strides = [1, 1]} : vector<8x96xf32> to vector<8x8xf32>
    %135 = vector.extract_strided_slice %85 {offsets = [0, 56], sizes = [8, 8], strides = [1, 1]} : vector<8x96xf32> to vector<8x8xf32>
    %136 = vector.extract_strided_slice %85 {offsets = [0, 88], sizes = [8, 8], strides = [1, 1]} : vector<8x96xf32> to vector<8x8xf32>
    %cst_49 = arith.constant dense<0.000000e+00> : vector<8x8xf32>
    %137 = tpu.matmul %134, %135, %cst_49 {dimension_numbers = #tpu.dot_dimension_numbers<[1], [1], [0], [0], [0, 0, 1, 0], [], []>} : vector<8x8xf32>, vector<8x8xf32>, vector<8x8xf32> -> vector<8x8xf32>
    %138 = arith.addf %137, %84 : vector<8x8xf32>
    %cst_50 = arith.constant dense<0xFF800000> : vector<8xf32>
    %139 = vector.multi_reduction <maximumf>, %138, %cst_50 [1] : vector<8x8xf32> to vector<8xf32>
    %140 = vector.shape_cast %139 : vector<8xf32> to vector<8x1xf32>
    %141 = vector.broadcast %140 : vector<8x1xf32> to vector<8x8xf32>
    %142 = arith.subf %138, %141 : vector<8x8xf32>
    %143 = math.exp %142 : vector<8x8xf32>
    %cst_51 = arith.constant dense<0.000000e+00> : vector<8xf32>
    %144 = vector.multi_reduction <add>, %143, %cst_51 [1] : vector<8x8xf32> to vector<8xf32>
    %145 = vector.shape_cast %144 : vector<8xf32> to vector<8x1xf32>
    %146 = tpu.reciprocal %145 : vector<8x1xf32> -> vector<8x1xf32>
    %147 = vector.broadcast %146 : vector<8x1xf32> to vector<8x8xf32>
    %148 = arith.mulf %143, %147 : vector<8x8xf32>
    %cst_52 = arith.constant dense<0.000000e+00> : vector<8x8xf32>
    %149 = tpu.matmul %148, %136, %cst_52 {dimension_numbers = #tpu.dot_dimension_numbers<[1], [0], [0], [1], [0, 0, 1, 1], [], []>} : vector<8x8xf32>, vector<8x8xf32>, vector<8x8xf32> -> vector<8x8xf32>
    %150 = tpu.concatenate %101, %117, %133, %149 in 1 : vector<8x8xf32>, vector<8x8xf32>, vector<8x8xf32>, vector<8x8xf32> -> vector<8x32xf32>
    %151 = tpu.concatenate %100, %116, %132, %148 in 1 : vector<8x8xf32>, vector<8x8xf32>, vector<8x8xf32>, vector<8x8xf32> -> vector<8x32xf32>
    %152 = tpu.concatenate %82, %150 in 0 : vector<8x32xf32>, vector<8x32xf32> -> vector<16x32xf32>
    %153 = tpu.concatenate %83, %151 in 0 : vector<8x32xf32>, vector<8x32xf32> -> vector<16x32xf32>
    %cst_53 = arith.constant dense<0.000000e+00> : vector<16x32xf32>
    %154 = tpu.matmul %152, %2, %cst_53 {dimension_numbers = #tpu.dot_dimension_numbers<[1], [0], [0], [1], [0, 0, 1, 1], [], []>} : vector<16x32xf32>, vector<32x32xf32>, vector<16x32xf32> -> vector<16x32xf32>
    %155 = vector.broadcast %6 : vector<1x32xf32> to vector<16x32xf32>
    %156 = arith.addf %154, %155 : vector<16x32xf32>
    %157 = arith.addf %156, %0 : vector<16x32xf32>
    %cst_54 = arith.constant dense<0.000000e+00> : vector<16xf32>
    %158 = vector.multi_reduction <add>, %157, %cst_54 [1] : vector<16x32xf32> to vector<16xf32>
    %159 = vector.shape_cast %158 : vector<16xf32> to vector<16x1xf32>
    %cst_55 = arith.constant 3.200000e+01 : f32
    %160 = vector.broadcast %cst_55 : f32 to vector<16x1xf32>
    %161 = arith.divf %159, %160 : vector<16x1xf32>
    %162 = vector.broadcast %161 : vector<16x1xf32> to vector<16x32xf32>
    %163 = arith.subf %157, %162 : vector<16x32xf32>
    %164 = arith.mulf %163, %163 : vector<16x32xf32>
    %cst_56 = arith.constant dense<0.000000e+00> : vector<16xf32>
    %165 = vector.multi_reduction <add>, %164, %cst_56 [1] : vector<16x32xf32> to vector<16xf32>
    %166 = vector.shape_cast %165 : vector<16xf32> to vector<16x1xf32>
    %cst_57 = arith.constant 3.200000e+01 : f32
    %167 = vector.broadcast %cst_57 : f32 to vector<16x1xf32>
    %168 = arith.divf %166, %167 : vector<16x1xf32>
    %169 = vector.broadcast %161 : vector<16x1xf32> to vector<16x32xf32>
    %170 = arith.subf %157, %169 : vector<16x32xf32>
    %cst_58 = arith.constant 9.99999974E-6 : f32
    %171 = vector.broadcast %cst_58 : f32 to vector<16x1xf32>
    %172 = arith.addf %168, %171 : vector<16x1xf32>
    %173 = math.rsqrt %172 : vector<16x1xf32>
    %174 = vector.broadcast %173 : vector<16x1xf32> to vector<16x32xf32>
    %175 = arith.mulf %170, %174 : vector<16x32xf32>
    %176 = vector.broadcast %7 : vector<1x32xf32> to vector<16x32xf32>
    %177 = arith.mulf %175, %176 : vector<16x32xf32>
    %178 = vector.broadcast %8 : vector<1x32xf32> to vector<16x32xf32>
    %179 = arith.addf %177, %178 : vector<16x32xf32>
    %cst_59 = arith.constant dense<0.000000e+00> : vector<16x64xf32>
    %180 = tpu.matmul %179, %3, %cst_59 {dimension_numbers = #tpu.dot_dimension_numbers<[1], [0], [0], [1], [0, 0, 1, 1], [], []>} : vector<16x32xf32>, vector<32x64xf32>, vector<16x64xf32> -> vector<16x64xf32>
    %181 = vector.broadcast %9 : vector<1x64xf32> to vector<16x64xf32>
    %182 = arith.addf %180, %181 : vector<16x64xf32>
    %cst_60 = arith.constant 0.000000e+00 : f32
    %183 = vector.broadcast %cst_60 : f32 to vector<16x64xf32>
    %184 = arith.maximumf %182, %183 : vector<16x64xf32>
    %cst_61 = arith.constant dense<0.000000e+00> : vector<16x32xf32>
    %185 = tpu.matmul %184, %4, %cst_61 {dimension_numbers = #tpu.dot_dimension_numbers<[1], [0], [0], [1], [0, 0, 1, 1], [], []>} : vector<16x64xf32>, vector<64x32xf32>, vector<16x32xf32> -> vector<16x32xf32>
    %186 = vector.broadcast %10 : vector<1x32xf32> to vector<16x32xf32>
    %187 = arith.addf %185, %186 : vector<16x32xf32>
    %188 = arith.addf %187, %179 : vector<16x32xf32>
    %cst_62 = arith.constant dense<0.000000e+00> : vector<16xf32>
    %189 = vector.multi_reduction <add>, %188, %cst_62 [1] : vector<16x32xf32> to vector<16xf32>
    %190 = vector.shape_cast %189 : vector<16xf32> to vector<16x1xf32>
    %cst_63 = arith.constant 3.200000e+01 : f32
    %191 = vector.broadcast %cst_63 : f32 to vector<16x1xf32>
    %192 = arith.divf %190, %191 : vector<16x1xf32>
    %193 = vector.broadcast %192 : vector<16x1xf32> to vector<16x32xf32>
    %194 = arith.subf %188, %193 : vector<16x32xf32>
    %195 = arith.mulf %194, %194 : vector<16x32xf32>
    %cst_64 = arith.constant dense<0.000000e+00> : vector<16xf32>
    %196 = vector.multi_reduction <add>, %195, %cst_64 [1] : vector<16x32xf32> to vector<16xf32>
    %197 = vector.shape_cast %196 : vector<16xf32> to vector<16x1xf32>
    %cst_65 = arith.constant 3.200000e+01 : f32
    %198 = vector.broadcast %cst_65 : f32 to vector<16x1xf32>
    %199 = arith.divf %197, %198 : vector<16x1xf32>
    %200 = vector.broadcast %192 : vector<16x1xf32> to vector<16x32xf32>
    %201 = arith.subf %188, %200 : vector<16x32xf32>
    %cst_66 = arith.constant 9.99999974E-6 : f32
    %202 = vector.broadcast %cst_66 : f32 to vector<16x1xf32>
    %203 = arith.addf %199, %202 : vector<16x1xf32>
    %204 = math.rsqrt %203 : vector<16x1xf32>
    %205 = vector.broadcast %204 : vector<16x1xf32> to vector<16x32xf32>
    %206 = arith.mulf %201, %205 : vector<16x32xf32>
    %207 = vector.broadcast %11 : vector<1x32xf32> to vector<16x32xf32>
    %208 = arith.mulf %206, %207 : vector<16x32xf32>
    %209 = vector.broadcast %12 : vector<1x32xf32> to vector<16x32xf32>
    %210 = arith.addf %208, %209 : vector<16x32xf32>
    %c0_67 = arith.constant 0 : index
    %c0_68 = arith.constant 0 : index
    %211 = vector.load %arg6[%c0_67, %c0_68] : memref<16x32xf32, #tpu.memory_space<vmem>>, vector<16x32xf32>
    tpu.vector_store %arg6[%c0_67, %c0_68], %210 {strides = array<i32>} : memref<16x32xf32, #tpu.memory_space<vmem>>, vector<16x32xf32>,
    %c0_69 = arith.constant 0 : index
    %c0_70 = arith.constant 0 : index
    %212 = vector.load %arg7[%c0_69, %c0_70] : memref<16x32xf32, #tpu.memory_space<vmem>>, vector<16x32xf32>
    tpu.vector_store %arg7[%c0_69, %c0_70], %153 {strides = array<i32>} : memref<16x32xf32, #tpu.memory_space<vmem>>, vector<16x32xf32>,
    return
  }
  func.func @transform_0(%arg0: i32) -> (i32, i32) {
    %c0_i32 = arith.constant 0 : i32
    %c0_i32_0 = arith.constant 0 : i32
    %c0_i32_1 = arith.constant 0 : i32
    return %c0_i32, %c0_i32_0 : i32, i32
  }
  func.func @transform_1(%arg0: i32) -> (i32, i32) {
    %c0_i32 = arith.constant 0 : i32
    %c0_i32_0 = arith.constant 0 : i32
    %c0_i32_1 = arith.constant 0 : i32
    return %c0_i32, %c0_i32_0 : i32, i32
  }
  func.func @transform_2(%arg0: i32) -> (i32, i32) {
    %c0_i32 = arith.constant 0 : i32
    %c0_i32_0 = arith.constant 0 : i32
    %c0_i32_1 = arith.constant 0 : i32
    return %c0_i32, %c0_i32_0 : i32, i32
  }
  func.func @transform_3(%arg0: i32) -> (i32, i32) {
    %c0_i32 = arith.constant 0 : i32
    %c0_i32_0 = arith.constant 0 : i32
    %c0_i32_1 = arith.constant 0 : i32
    return %c0_i32, %c0_i32_0 : i32, i32
  }
  func.func @transform_4(%arg0: i32) -> (i32, i32) {
    %c0_i32 = arith.constant 0 : i32
    %c0_i32_0 = arith.constant 0 : i32
    %c0_i32_1 = arith.constant 0 : i32
    return %c0_i32, %c0_i32_0 : i32, i32
  }
  func.func @transform_5(%arg0: i32) -> (i32, i32) {
    %c0_i32 = arith.constant 0 : i32
    %c0_i32_0 = arith.constant 0 : i32
    %c0_i32_1 = arith.constant 0 : i32
    return %c0_i32, %c0_i32_0 : i32, i32
  }
  func.func @transform_6(%arg0: i32) -> (i32, i32) {
    %c0_i32 = arith.constant 0 : i32
    %c0_i32_0 = arith.constant 0 : i32
    %c0_i32_1 = arith.constant 0 : i32
    return %c0_i32, %c0_i32_0 : i32, i32
  }
}

</mosaic_0001>

<llo_original>
// kernel: tpu_custom_call.1
$region0: #{tpu_custom_call.1}
  #allocation0 [shape = 'u32[]', space=smem, size = 0x4, offset = 0x4, fixed_abs, tag = 'smem constant byte address 0x4 - core index']
  #allocation1 [shape = 'u32[72,128]{1,0:T(1,128)}', space=vmem, size = 0x9000, scoped, tag = 'internal scratch']
  %s0 = inlined_call_operand.vmem [shape: f32[16,32], index: 0, kind: input, shape index: {}]
  %s1 = inlined_call_operand.vmem [shape: f32[16,8], index: 1, kind: input, shape index: {}]
  %s2 = inlined_call_operand.vmem [shape: f32[32,192], index: 2, kind: input, shape index: {}]
  %s3 = inlined_call_operand.vmem [shape: f32[64,32], index: 3, kind: input, shape index: {}]
  %s4 = inlined_call_operand.vmem [shape: f32[1,352], index: 4, kind: input, shape index: {}]
  %s5 = inlined_call_operand.hbm [shape: f32[16,32], index: 5, kind: output, shape index: {0}]
  %s6 = inlined_call_operand.hbm [shape: f32[16,32], index: 6, kind: output, shape index: {1}]
  %7 = xla_tuple %s5, %s6
  %s8 = sld [smem:[#allocation0]]
  $region38: #{tpu_custom_call.1} parent=0
    _
  %s10 = ssub.s32 1, %s8
  %s11 = scalar_select 0, %s10, %s8
  $region1: #{tpu_custom_call.1} parent=0
    #allocation2 [shape = 'u8[8192]{0}', space=vmem, size = 0x2000, scoped, tag = 'output window, operand 0, single buffered']
    #allocation3 [shape = 's32[1]{0}', space=sflag, size = 0x4, scoped, tag = 'scoped memory for tpu_custom_call.1']
    #allocation4 [shape = 'u8[8192]{0}', space=vmem, size = 0x2000, scoped, tag = 'output window, operand 1, single buffered']
    #allocation5 [shape = 's32[1]{0}', space=sflag, size = 0x4, scoped, tag = 'scoped memory for tpu_custom_call.1']
    %12 = vsyncpa [#allocation3], 0
    %13 = vsyncpa [#allocation5], 0
    // Predicated region
    $region2: #{tpu_custom_call.1} parent=1 // pred_check
      _
    $region3: #{tpu_custom_call.1} parent=1 // pred_check_branch
      %15 = sbr.rel (0) target = $region5
    $region4: #{tpu_custom_call.1} parent=1 // pred_region
      _
    $region5: #{tpu_custom_call.1} parent=1 // pred_fallthru
      _
    // Predicated region
    $region6: #{tpu_custom_call.1} parent=1 // pred_check
      _
    $region7: #{tpu_custom_call.1} parent=1 // pred_check_branch
      %17 = sbr.rel (0) target = $region9
    $region8: #{tpu_custom_call.1} parent=1 // pred_region
      _
    $region9: #{tpu_custom_call.1} parent=1 // pred_fallthru
      _
    // Predicated region
    $region10: #{tpu_custom_call.1} parent=1 // pred_check
      _
    $region11: #{tpu_custom_call.1} parent=1 // pred_check_branch
      %19 = sbr.rel (0) target = $region13
    $region12: #{tpu_custom_call.1} parent=1 // pred_region
      _
    $region13: #{tpu_custom_call.1} parent=1 // pred_fallthru
      _
    // Predicated region
    $region14: #{tpu_custom_call.1} parent=1 // pred_check
      _
    $region15: #{tpu_custom_call.1} parent=1 // pred_check_branch
      %21 = sbr.rel (0) target = $region17
    $region16: #{tpu_custom_call.1} parent=1 // pred_region
      _
    $region17: #{tpu_custom_call.1} parent=1 // pred_fallthru
      _
    // Predicated region
    $region18: #{tpu_custom_call.1} parent=1 // pred_check
      _
    $region19: #{tpu_custom_call.1} parent=1 // pred_check_branch
      %23 = sbr.rel (0) target = $region21
    $region20: #{tpu_custom_call.1} parent=1 // pred_region
      _
    $region21: #{tpu_custom_call.1} parent=1 // pred_fallthru
      _
    %v24 = vld [vmem:[%s0] sm:$0xff]
    %v25 = vld [vmem:[%s0 + $0x8] sm:$0xff]
    %v26 = vld [vmem:[%s2] sm:$0xff]
    %v27 = vld [vmem:[%s2 + $0x10] sm:$0xff]
    %v28 = vld [vmem:[%s2 + $0x20] sm:$0xff]
    %v29 = vld [vmem:[%s2 + $0x30] sm:$0xff]
    %v30 = vld [vmem:[%s2 + $0x8] sm:$0xff]
    %v31 = vld [vmem:[%s2 + $0x18] sm:$0xff]
    %v32 = vld [vmem:[%s2 + $0x28] sm:$0xff]
    %v33 = vld [vmem:[%s2 + $0x38] sm:$0xff]
    %v34 = vld [vmem:[%s3] sm:$0xff]
    %v35 = vld [vmem:[%s3 + $0x8] sm:$0xff]
    %v36 = vld [vmem:[%s3 + $0x10] sm:$0xff]
    %v37 = vld [vmem:[%s3 + $0x18] sm:$0xff]
    %v38 = vld [vmem:[%s3 + $0x20] sm:$0xff]
    %v39 = vld [vmem:[%s3 + $0x28] sm:$0xff]
    %v40 = vld [vmem:[%s3 + $0x30] sm:$0xff]
    %v41 = vld [vmem:[%s3 + $0x38] sm:$0xff]
    %v42 = vld [vmem:[%s4] sm:$0x1]
    %v43 = vld [vmem:[%s4 + $0x1] sm:$0x1]
    %v44 = vld [vmem:[%s4 + $0x2] sm:$0x1]
    %v46 = vperm.slane %v42, 0
    %vm48 = vcmask 261120
    %v50 = vsel %vm48, %v24, 0
    %v53 = vsel %vm48, %v25, 0
    %55 = vmatpush.msra.mxu0 0.0
    %56 = vmatpush.msra.mxu0 0.0
    %57 = vmatpush.msra.mxu0 0.0
    %58 = vmatpush.msra.mxu0 0.0
    %59 = vmatpush.msra.mxu0 0.0
    %60 = vmatpush.msra.mxu0 0.0
    %61 = vmatpush.msra.mxu0 0.0
    %62 = vmatpush.msra.mxu0 0.0
    %63 = vmatpush.msra.mxu0 0.0
    %64 = vmatpush.msra.mxu0 0.0
    %65 = vmatpush.msra.mxu0 0.0
    %66 = vmatpush.msra.mxu0 0.0
    %67 = vmatpush.msra.mxu0 %v29
    %68 = vmatpush.msra.mxu0 %v28
    %69 = vmatpush.msra.mxu0 %v27
    %70 = vmatpush.msra.mxu0 %v26
    %71 = vmatmul.f32.gmra.mxu0 %v50
    %v72 = vpop.f32.mrf.mxu0
    %v73 = vadd.f32 %v46, %v72
    %74 = vmatmul.f32.gmra.mxu0 %v53
    %v75 = vpop.f32.mrf.mxu0
    %v76 = vadd.f32 %v46, %v75
    %77 = vdwg.mxu0
    %v78 = vld [vmem:[%s1] sm:$0xff]
    %80 = vrot.lane.b32.xlu0 %v73, 96
    %v81 = vpop.permute.xlu0 %80
    %vm82 = vcmask 64512
    %v83 = vsel %vm82, %v73, 0
    %v85 = vsel %vm82, %v81, 0
    %87 = vmatpush.xpose.msra.mxu0 0.0
    %88 = vmatpush.xpose.msra.mxu0 0.0
    %89 = vmatpush.xpose.msra.mxu0 0.0
    %90 = vmatpush.xpose.msra.mxu0 0.0
    %91 = vmatpush.xpose.msra.mxu0 0.0
    %92 = vmatpush.xpose.msra.mxu0 0.0
    %93 = vmatpush.xpose.msra.mxu0 0.0
    %94 = vmatpush.xpose.msra.mxu0 0.0
    %95 = vmatpush.xpose.msra.mxu0 0.0
    %96 = vmatpush.xpose.msra.mxu0 0.0
    %97 = vmatpush.xpose.msra.mxu0 0.0
    %98 = vmatpush.xpose.msra.mxu0 0.0
    %99 = vmatpush.xpose.msra.mxu0 0.0
    %100 = vmatpush.xpose.msra.mxu0 0.0
    %101 = vmatpush.xpose.msra.mxu0 0.0
    %102 = vmatpush.xpose.msra.mxu0 %v85
    %103 = vmatmul.f32.gmra.mxu0 %v83
    %v104 = vpop.f32.mrf.mxu0
    %v105 = vadd.f32 %v78, %v104
    %106 = vdwg.mxu0
    %v107 = vsel %vm82, %v105, -inf
    %108 = vmax.xlane.f32.xlu0 %v107
    %v109 = vpop.xlane.xlu0 %108
    %v110 = vsub.f32 %v105, %v109
    %v111 = vmul.f32 %v110, 1.442695
    %v112 = vpow.pop %v111
    %v113 = vsel %vm82, %v112, 0.0
    %114 = vadd.xlane.f32.xlu0 %v113
    %v115 = vpop.xlane.xlu0 %114
    %v116 = vrcp.pop %v115
    %v117 = vmul.f32 %v115, %v116
    %v118 = vsub.f32 1.0, %v117
    %v119 = vmul.f32 %v116, %v118
    %v120 = vadd.f32 %v116, %v119
    %vm121 = vweird.f32 %v115
    %vm122 = vweird.f32 %v116
    %vm123 = vmor %vm121, %vm122
    %v124 = vsel %vm123, %v116, %v120
    %v125 = vand.u32 2147483647, %v115
    %vm126 = vcmp.eq.f32.partialorder %v125, 8.507059e+37
    %v127 = vand.u32 %v115, 2147483648
    %v128 = vor.u32 1.1754944e-38, %v127
    %v129 = vsel %vm126, %v128, %v124
    %v130 = vmul.f32 %v112, %v129
    %131 = vrot.lane.b32.xlu0 %v73, 64
    %v132 = vpop.permute.xlu0 %131
    %v135 = vsel %vm82, %v130, 0
    %137 = vmatpush.msra.mxu0 0.0
    %138 = vmatpush.msra.mxu0 0.0
    %139 = vmatpush.msra.mxu0 0.0
    %140 = vmatpush.msra.mxu0 0.0
    %141 = vmatpush.msra.mxu0 0.0
    %142 = vmatpush.msra.mxu0 0.0
    %143 = vmatpush.msra.mxu0 0.0
    %144 = vmatpush.msra.mxu0 0.0
    %145 = vmatpush.msra.mxu0 0.0
    %146 = vmatpush.msra.mxu0 0.0
    %147 = vmatpush.msra.mxu0 0.0
    %148 = vmatpush.msra.mxu0 0.0
    %149 = vmatpush.msra.mxu0 0.0
    %150 = vmatpush.msra.mxu0 0.0
    %151 = vmatpush.msra.mxu0 0.0
    %152 = vmatpush.msra.mxu0 %v132
    %153 = vmatmul.f32.gmra.mxu0 %v135
    %v154 = vpop.f32.mrf.mxu0
    %v155 = vadd.f32 0.0, %v154
    %156 = vdwg.mxu0
    %157 = vrot.lane.b32.xlu0 %v73, 120
    %v158 = vpop.permute.xlu0 %157
    %159 = vrot.lane.b32.xlu0 %v73, 88
    %v160 = vpop.permute.xlu0 %159
    %v161 = vsel %vm82, %v158, 0
    %v163 = vsel %vm82, %v160, 0
    %165 = vmatpush.xpose.msra.mxu0 0.0
    %166 = vmatpush.xpose.msra.mxu0 0.0
    %167 = vmatpush.xpose.msra.mxu0 0.0
    %168 = vmatpush.xpose.msra.mxu0 0.0
    %169 = vmatpush.xpose.msra.mxu0 0.0
    %170 = vmatpush.xpose.msra.mxu0 0.0
    %171 = vmatpush.xpose.msra.mxu0 0.0
    %172 = vmatpush.xpose.msra.mxu0 0.0
    %173 = vmatpush.xpose.msra.mxu0 0.0
    %174 = vmatpush.xpose.msra.mxu0 0.0
    %175 = vmatpush.xpose.msra.mxu0 0.0
    %176 = vmatpush.xpose.msra.mxu0 0.0
    %177 = vmatpush.xpose.msra.mxu0 0.0
    %178 = vmatpush.xpose.msra.mxu0 0.0
    %179 = vmatpush.xpose.msra.mxu0 0.0
    %180 = vmatpush.xpose.msra.mxu0 %v163
    %181 = vmatmul.f32.gmra.mxu0 %v161
    %v182 = vpop.f32.mrf.mxu0
    %v183 = vadd.f32 %v78, %v182
    %184 = vdwg.mxu0
    %v185 = vsel %vm82, %v183, -inf
    %186 = vmax.xlane.f32.xlu0 %v185
    %v187 = vpop.xlane.xlu0 %186
    %v188 = vsub.f32 %v183, %v187
    %v189 = vmul.f32 %v188, 1.442695
    %v190 = vpow.pop %v189
    %v191 = vsel %vm82, %v190, 0.0
    %192 = vadd.xlane.f32.xlu0 %v191
    %v193 = vpop.xlane.xlu0 %192
    %v194 = vrcp.pop %v193
    %v195 = vmul.f32 %v193, %v194
    %v196 = vsub.f32 1.0, %v195
    %v197 = vmul.f32 %v194, %v196
    %v198 = vadd.f32 %v194, %v197
    %vm199 = vweird.f32 %v193
    %vm200 = vweird.f32 %v194
    %vm201 = vmor %vm199, %vm200
    %v202 = vsel %vm201, %v194, %v198
    %v203 = vand.u32 2147483647, %v193
    %vm204 = vcmp.eq.f32.partialorder %v203, 8.507059e+37
    %v205 = vand.u32 %v193, 2147483648
    %v206 = vor.u32 1.1754944e-38, %v205
    %v207 = vsel %vm204, %v206, %v202
    %v208 = vmul.f32 %v190, %v207
    %209 = vrot.lane.b32.xlu0 %v73, 56
    %v210 = vpop.permute.xlu0 %209
    %v213 = vsel %vm82, %v208, 0
    %215 = vmatpush.msra.mxu0 0.0
    %216 = vmatpush.msra.mxu0 0.0
    %217 = vmatpush.msra.mxu0 0.0
    %218 = vmatpush.msra.mxu0 0.0
    %219 = vmatpush.msra.mxu0 0.0
    %220 = vmatpush.msra.mxu0 0.0
    %221 = vmatpush.msra.mxu0 0.0
    %222 = vmatpush.msra.mxu0 0.0
    %223 = vmatpush.msra.mxu0 0.0
    %224 = vmatpush.msra.mxu0 0.0
    %225 = vmatpush.msra.mxu0 0.0
    %226 = vmatpush.msra.mxu0 0.0
    %227 = vmatpush.msra.mxu0 0.0
    %228 = vmatpush.msra.mxu0 0.0
    %229 = vmatpush.msra.mxu0 0.0
    %230 = vmatpush.msra.mxu0 %v210
    %231 = vmatmul.f32.gmra.mxu0 %v213
    %v232 = vpop.f32.mrf.mxu0
    %v233 = vadd.f32 0.0, %v232
    %234 = vdwg.mxu0
    %235 = vrot.lane.b32.xlu0 %v73, 112
    %v236 = vpop.permute.xlu0 %235
    %237 = vrot.lane.b32.xlu0 %v73, 80
    %v238 = vpop.permute.xlu0 %237
    %v239 = vsel %vm82, %v236, 0
    %v241 = vsel %vm82, %v238, 0
    %243 = vmatpush.xpose.msra.mxu0 0.0
    %244 = vmatpush.xpose.msra.mxu0 0.0
    %245 = vmatpush.xpose.msra.mxu0 0.0
    %246 = vmatpush.xpose.msra.mxu0 0.0
    %247 = vmatpush.xpose.msra.mxu0 0.0
    %248 = vmatpush.xpose.msra.mxu0 0.0
    %249 = vmatpush.xpose.msra.mxu0 0.0
    %250 = vmatpush.xpose.msra.mxu0 0.0
    %251 = vmatpush.xpose.msra.mxu0 0.0
    %252 = vmatpush.xpose.msra.mxu0 0.0
    %253 = vmatpush.xpose.msra.mxu0 0.0
    %254 = vmatpush.xpose.msra.mxu0 0.0
    %255 = vmatpush.xpose.msra.mxu0 0.0
    %256 = vmatpush.xpose.msra.mxu0 0.0
    %257 = vmatpush.xpose.msra.mxu0 0.0
    %258 = vmatpush.xpose.msra.mxu0 %v241
    %259 = vmatmul.f32.gmra.mxu0 %v239
    %v260 = vpop.f32.mrf.mxu0
    %v261 = vadd.f32 %v78, %v260
    %262 = vdwg.mxu0
    %v263 = vsel %vm82, %v261, -inf
    %264 = vmax.xlane.f32.xlu0 %v263
    %v265 = vpop.xlane.xlu0 %264
    %v266 = vsub.f32 %v261, %v265
    %v267 = vmul.f32 %v266, 1.442695
    %v268 = vpow.pop %v267
    %v269 = vsel %vm82, %v268, 0.0
    %270 = vadd.xlane.f32.xlu0 %v269
    %v271 = vpop.xlane.xlu0 %270
    %v272 = vrcp.pop %v271
    %v273 = vmul.f32 %v271, %v272
    %v274 = vsub.f32 1.0, %v273
    %v275 = vmul.f32 %v272, %v274
    %v276 = vadd.f32 %v272, %v275
    %vm277 = vweird.f32 %v271
    %vm278 = vweird.f32 %v272
    %vm279 = vmor %vm277, %vm278
    %v280 = vsel %vm279, %v272, %v276
    %v281 = vand.u32 2147483647, %v271
    %vm282 = vcmp.eq.f32.partialorder %v281, 8.507059e+37
    %v283 = vand.u32 %v271, 2147483648
    %v284 = vor.u32 1.1754944e-38, %v283
    %v285 = vsel %vm282, %v284, %v280
    %v286 = vmul.f32 %v268, %v285
    %287 = vrot.lane.b32.xlu0 %v73, 48
    %v288 = vpop.permute.xlu0 %287
    %v291 = vsel %vm82, %v286, 0
    %293 = vmatpush.msra.mxu0 0.0
    %294 = vmatpush.msra.mxu0 0.0
    %295 = vmatpush.msra.mxu0 0.0
    %296 = vmatpush.msra.mxu0 0.0
    %297 = vmatpush.msra.mxu0 0.0
    %298 = vmatpush.msra.mxu0 0.0
    %299 = vmatpush.msra.mxu0 0.0
    %300 = vmatpush.msra.mxu0 0.0
    %301 = vmatpush.msra.mxu0 0.0
    %302 = vmatpush.msra.mxu0 0.0
    %303 = vmatpush.msra.mxu0 0.0
    %304 = vmatpush.msra.mxu0 0.0
    %305 = vmatpush.msra.mxu0 0.0
    %306 = vmatpush.msra.mxu0 0.0
    %307 = vmatpush.msra.mxu0 0.0
    %308 = vmatpush.msra.mxu0 %v288
    %309 = vmatmul.f32.gmra.mxu0 %v291
    %v310 = vpop.f32.mrf.mxu0
    %v311 = vadd.f32 0.0, %v310
    %312 = vdwg.mxu0
    %313 = vrot.lane.b32.xlu0 %v73, 104
    %v314 = vpop.permute.xlu0 %313
    %315 = vrot.lane.b32.xlu0 %v73, 72
    %v316 = vpop.permute.xlu0 %315
    %v317 = vsel %vm82, %v314, 0
    %v319 = vsel %vm82, %v316, 0
    %321 = vmatpush.xpose.msra.mxu0 0.0
    %322 = vmatpush.xpose.msra.mxu0 0.0
    %323 = vmatpush.xpose.msra.mxu0 0.0
    %324 = vmatpush.xpose.msra.mxu0 0.0
    %325 = vmatpush.xpose.msra.mxu0 0.0
    %326 = vmatpush.xpose.msra.mxu0 0.0
    %327 = vmatpush.xpose.msra.mxu0 0.0
    %328 = vmatpush.xpose.msra.mxu0 0.0
    %329 = vmatpush.xpose.msra.mxu0 0.0
    %330 = vmatpush.xpose.msra.mxu0 0.0
    %331 = vmatpush.xpose.msra.mxu0 0.0
    %332 = vmatpush.xpose.msra.mxu0 0.0
    %333 = vmatpush.xpose.msra.mxu0 0.0
    %334 = vmatpush.xpose.msra.mxu0 0.0
    %335 = vmatpush.xpose.msra.mxu0 0.0
    %336 = vmatpush.xpose.msra.mxu0 %v319
    %337 = vmatmul.f32.gmra.mxu0 %v317
    %v338 = vpop.f32.mrf.mxu0
    %v339 = vadd.f32 %v78, %v338
    %340 = vdwg.mxu0
    %v341 = vsel %vm82, %v339, -inf
    %342 = vmax.xlane.f32.xlu0 %v341
    %v343 = vpop.xlane.xlu0 %342
    %v344 = vsub.f32 %v339, %v343
    %v345 = vmul.f32 %v344, 1.442695
    %v346 = vpow.pop %v345
    %v347 = vsel %vm82, %v346, 0.0
    %348 = vadd.xlane.f32.xlu0 %v347
    %v349 = vpop.xlane.xlu0 %348
    %v350 = vrcp.pop %v349
    %v351 = vmul.f32 %v349, %v350
    %v352 = vsub.f32 1.0, %v351
    %v353 = vmul.f32 %v350, %v352
    %v354 = vadd.f32 %v350, %v353
    %vm355 = vweird.f32 %v349
    %vm356 = vweird.f32 %v350
    %vm357 = vmor %vm355, %vm356
    %v358 = vsel %vm357, %v350, %v354
    %v359 = vand.u32 2147483647, %v349
    %vm360 = vcmp.eq.f32.partialorder %v359, 8.507059e+37
    %v361 = vand.u32 %v349, 2147483648
    %v362 = vor.u32 1.1754944e-38, %v361
    %v363 = vsel %vm360, %v362, %v358
    %v364 = vmul.f32 %v346, %v363
    %365 = vrot.lane.b32.xlu0 %v73, 40
    %v366 = vpop.permute.xlu0 %365
    %v369 = vsel %vm82, %v364, 0
    %371 = vmatpush.msra.mxu0 0.0
    %372 = vmatpush.msra.mxu0 0.0
    %373 = vmatpush.msra.mxu0 0.0
    %374 = vmatpush.msra.mxu0 0.0
    %375 = vmatpush.msra.mxu0 0.0
    %376 = vmatpush.msra.mxu0 0.0
    %377 = vmatpush.msra.mxu0 0.0
    %378 = vmatpush.msra.mxu0 0.0
    %379 = vmatpush.msra.mxu0 0.0
    %380 = vmatpush.msra.mxu0 0.0
    %381 = vmatpush.msra.mxu0 0.0
    %382 = vmatpush.msra.mxu0 0.0
    %383 = vmatpush.msra.mxu0 0.0
    %384 = vmatpush.msra.mxu0 0.0
    %385 = vmatpush.msra.mxu0 0.0
    %386 = vmatpush.msra.mxu0 %v366
    %387 = vmatmul.f32.gmra.mxu0 %v369
    %v388 = vpop.f32.mrf.mxu0
    %v389 = vadd.f32 0.0, %v388
    %390 = vdwg.mxu0
    %392 = vrot.lane.b32.xlu0 %v233, 8
    %v393 = vpop.permute.xlu0 %392
    %396 = vrot.lane.b32.xlu0 %v311, 16
    %v397 = vpop.permute.xlu0 %396
    %400 = vrot.lane.b32.xlu0 %v389, 24
    %v401 = vpop.permute.xlu0 %400
    %v403 = vsel %vm82, %v155, %v393
    %vm404 = vcmask 130048
    %v405 = vsel %vm404, %v403, %v397
    %vm406 = vcmask 195584
    %v407 = vsel %vm406, %v405, %v401
    %408 = vrot.lane.b32.xlu0 %v208, 8
    %v409 = vpop.permute.xlu0 %408
    %411 = vrot.lane.b32.xlu0 %v286, 16
    %v412 = vpop.permute.xlu0 %411
    %414 = vrot.lane.b32.xlu0 %v364, 24
    %v415 = vpop.permute.xlu0 %414
    %v417 = vsel %vm82, %v130, %v409
    %v418 = vsel %vm404, %v417, %v412
    %v419 = vsel %vm406, %v418, %v415
    %v420 = vld [vmem:[%s1 + $0x8] sm:$0xff]
    %422 = vrot.lane.b32.xlu0 %v76, 96
    %v423 = vpop.permute.xlu0 %422
    %v424 = vsel %vm82, %v76, 0
    %v426 = vsel %vm82, %v423, 0
    %428 = vmatpush.xpose.msra.mxu0 0.0
    %429 = vmatpush.xpose.msra.mxu0 0.0
    %430 = vmatpush.xpose.msra.mxu0 0.0
    %431 = vmatpush.xpose.msra.mxu0 0.0
    %432 = vmatpush.xpose.msra.mxu0 0.0
    %433 = vmatpush.xpose.msra.mxu0 0.0
    %434 = vmatpush.xpose.msra.mxu0 0.0
    %435 = vmatpush.xpose.msra.mxu0 0.0
    %436 = vmatpush.xpose.msra.mxu0 0.0
    %437 = vmatpush.xpose.msra.mxu0 0.0
    %438 = vmatpush.xpose.msra.mxu0 0.0
    %439 = vmatpush.xpose.msra.mxu0 0.0
    %440 = vmatpush.xpose.msra.mxu0 0.0
    %441 = vmatpush.xpose.msra.mxu0 0.0
    %442 = vmatpush.xpose.msra.mxu0 0.0
    %443 = vmatpush.xpose.msra.mxu0 %v426
    %444 = vmatmul.f32.gmra.mxu0 %v424
    %v445 = vpop.f32.mrf.mxu0
    %v446 = vadd.f32 %v420, %v445
    %447 = vdwg.mxu0
    %v448 = vsel %vm82, %v446, -inf
    %449 = vmax.xlane.f32.xlu0 %v448
    %v450 = vpop.xlane.xlu0 %449
    %v451 = vsub.f32 %v446, %v450
    %v452 = vmul.f32 %v451, 1.442695
    %v453 = vpow.pop %v452
    %v454 = vsel %vm82, %v453, 0.0
    %455 = vadd.xlane.f32.xlu0 %v454
    %v456 = vpop.xlane.xlu0 %455
    %v457 = vrcp.pop %v456
    %v458 = vmul.f32 %v456, %v457
    %v459 = vsub.f32 1.0, %v458
    %v460 = vmul.f32 %v457, %v459
    %v461 = vadd.f32 %v457, %v460
    %vm462 = vweird.f32 %v456
    %vm463 = vweird.f32 %v457
    %vm464 = vmor %vm462, %vm463
    %v465 = vsel %vm464, %v457, %v461
    %v466 = vand.u32 2147483647, %v456
    %vm467 = vcmp.eq.f32.partialorder %v466, 8.507059e+37
    %v468 = vand.u32 %v456, 2147483648
    %v469 = vor.u32 1.1754944e-38, %v468
    %v470 = vsel %vm467, %v469, %v465
    %v471 = vmul.f32 %v453, %v470
    %472 = vrot.lane.b32.xlu0 %v76, 64
    %v473 = vpop.permute.xlu0 %472
    %v476 = vsel %vm82, %v471, 0
    %478 = vmatpush.msra.mxu0 0.0
    %479 = vmatpush.msra.mxu0 0.0
    %480 = vmatpush.msra.mxu0 0.0
    %481 = vmatpush.msra.mxu0 0.0
    %482 = vmatpush.msra.mxu0 0.0
    %483 = vmatpush.msra.mxu0 0.0
    %484 = vmatpush.msra.mxu0 0.0
    %485 = vmatpush.msra.mxu0 0.0
    %486 = vmatpush.msra.mxu0 0.0
    %487 = vmatpush.msra.mxu0 0.0
    %488 = vmatpush.msra.mxu0 0.0
    %489 = vmatpush.msra.mxu0 0.0
    %490 = vmatpush.msra.mxu0 0.0
    %491 = vmatpush.msra.mxu0 0.0
    %492 = vmatpush.msra.mxu0 0.0
    %493 = vmatpush.msra.mxu0 %v473
    %494 = vmatmul.f32.gmra.mxu0 %v476
    %v495 = vpop.f32.mrf.mxu0
    %v496 = vadd.f32 0.0, %v495
    %497 = vdwg.mxu0
    %498 = vrot.lane.b32.xlu0 %v76, 120
    %v499 = vpop.permute.xlu0 %498
    %500 = vrot.lane.b32.xlu0 %v76, 88
    %v501 = vpop.permute.xlu0 %500
    %v502 = vsel %vm82, %v499, 0
    %v504 = vsel %vm82, %v501, 0
    %506 = vmatpush.xpose.msra.mxu0 0.0
    %507 = vmatpush.xpose.msra.mxu0 0.0
    %508 = vmatpush.xpose.msra.mxu0 0.0
    %509 = vmatpush.xpose.msra.mxu0 0.0
    %510 = vmatpush.xpose.msra.mxu0 0.0
    %511 = vmatpush.xpose.msra.mxu0 0.0
    %512 = vmatpush.xpose.msra.mxu0 0.0
    %513 = vmatpush.xpose.msra.mxu0 0.0
    %514 = vmatpush.xpose.msra.mxu0 0.0
    %515 = vmatpush.xpose.msra.mxu0 0.0
    %516 = vmatpush.xpose.msra.mxu0 0.0
    %517 = vmatpush.xpose.msra.mxu0 0.0
    %518 = vmatpush.xpose.msra.mxu0 0.0
    %519 = vmatpush.xpose.msra.mxu0 0.0
    %520 = vmatpush.xpose.msra.mxu0 0.0
    %521 = vmatpush.xpose.msra.mxu0 %v504
    %522 = vmatmul.f32.gmra.mxu0 %v502
    %v523 = vpop.f32.mrf.mxu0
    %v524 = vadd.f32 %v420, %v523
    %525 = vdwg.mxu0
    %v526 = vsel %vm82, %v524, -inf
    %527 = vmax.xlane.f32.xlu0 %v526
    %v528 = vpop.xlane.xlu0 %527
    %v529 = vsub.f32 %v524, %v528
    %v530 = vmul.f32 %v529, 1.442695
    %v531 = vpow.pop %v530
    %v532 = vsel %vm82, %v531, 0.0
    %533 = vadd.xlane.f32.xlu0 %v532
    %v534 = vpop.xlane.xlu0 %533
    %v535 = vrcp.pop %v534
    %v536 = vmul.f32 %v534, %v535
    %v537 = vsub.f32 1.0, %v536
    %v538 = vmul.f32 %v535, %v537
    %v539 = vadd.f32 %v535, %v538
    %vm540 = vweird.f32 %v534
    %vm541 = vweird.f32 %v535
    %vm542 = vmor %vm540, %vm541
    %v543 = vsel %vm542, %v535, %v539
    %v544 = vand.u32 2147483647, %v534
    %vm545 = vcmp.eq.f32.partialorder %v544, 8.507059e+37
    %v546 = vand.u32 %v534, 2147483648
    %v547 = vor.u32 1.1754944e-38, %v546
    %v548 = vsel %vm545, %v547, %v543
    %v549 = vmul.f32 %v531, %v548
    %550 = vrot.lane.b32.xlu0 %v76, 56
    %v551 = vpop.permute.xlu0 %550
    %v554 = vsel %vm82, %v549, 0
    %556 = vmatpush.msra.mxu0 0.0
    %557 = vmatpush.msra.mxu0 0.0
    %558 = vmatpush.msra.mxu0 0.0
    %559 = vmatpush.msra.mxu0 0.0
    %560 = vmatpush.msra.mxu0 0.0
    %561 = vmatpush.msra.mxu0 0.0
    %562 = vmatpush.msra.mxu0 0.0
    %563 = vmatpush.msra.mxu0 0.0
    %564 = vmatpush.msra.mxu0 0.0
    %565 = vmatpush.msra.mxu0 0.0
    %566 = vmatpush.msra.mxu0 0.0
    %567 = vmatpush.msra.mxu0 0.0
    %568 = vmatpush.msra.mxu0 0.0
    %569 = vmatpush.msra.mxu0 0.0
    %570 = vmatpush.msra.mxu0 0.0
    %571 = vmatpush.msra.mxu0 %v551
    %572 = vmatmul.f32.gmra.mxu0 %v554
    %v573 = vpop.f32.mrf.mxu0
    %v574 = vadd.f32 0.0, %v573
    %575 = vdwg.mxu0
    %576 = vrot.lane.b32.xlu0 %v76, 112
    %v577 = vpop.permute.xlu0 %576
    %578 = vrot.lane.b32.xlu0 %v76, 80
    %v579 = vpop.permute.xlu0 %578
    %v580 = vsel %vm82, %v577, 0
    %v582 = vsel %vm82, %v579, 0
    %584 = vmatpush.xpose.msra.mxu0 0.0
    %585 = vmatpush.xpose.msra.mxu0 0.0
    %586 = vmatpush.xpose.msra.mxu0 0.0
    %587 = vmatpush.xpose.msra.mxu0 0.0
    %588 = vmatpush.xpose.msra.mxu0 0.0
    %589 = vmatpush.xpose.msra.mxu0 0.0
    %590 = vmatpush.xpose.msra.mxu0 0.0
    %591 = vmatpush.xpose.msra.mxu0 0.0
    %592 = vmatpush.xpose.msra.mxu0 0.0
    %593 = vmatpush.xpose.msra.mxu0 0.0
    %594 = vmatpush.xpose.msra.mxu0 0.0
    %595 = vmatpush.xpose.msra.mxu0 0.0
    %596 = vmatpush.xpose.msra.mxu0 0.0
    %597 = vmatpush.xpose.msra.mxu0 0.0
    %598 = vmatpush.xpose.msra.mxu0 0.0
    %599 = vmatpush.xpose.msra.mxu0 %v582
    %600 = vmatmul.f32.gmra.mxu0 %v580
    %v601 = vpop.f32.mrf.mxu0
    %v602 = vadd.f32 %v420, %v601
    %603 = vdwg.mxu0
    %v604 = vsel %vm82, %v602, -inf
    %605 = vmax.xlane.f32.xlu0 %v604
    %v606 = vpop.xlane.xlu0 %605
    %v607 = vsub.f32 %v602, %v606
    %v608 = vmul.f32 %v607, 1.442695
    %v609 = vpow.pop %v608
    %v610 = vsel %vm82, %v609, 0.0
    %611 = vadd.xlane.f32.xlu0 %v610
    %v612 = vpop.xlane.xlu0 %611
    %v613 = vrcp.pop %v612
    %v614 = vmul.f32 %v612, %v613
    %v615 = vsub.f32 1.0, %v614
    %v616 = vmul.f32 %v613, %v615
    %v617 = vadd.f32 %v613, %v616
    %vm618 = vweird.f32 %v612
    %vm619 = vweird.f32 %v613
    %vm620 = vmor %vm618, %vm619
    %v621 = vsel %vm620, %v613, %v617
    %v622 = vand.u32 2147483647, %v612
    %vm623 = vcmp.eq.f32.partialorder %v622, 8.507059e+37
    %v624 = vand.u32 %v612, 2147483648
    %v625 = vor.u32 1.1754944e-38, %v624
    %v626 = vsel %vm623, %v625, %v621
    %v627 = vmul.f32 %v609, %v626
    %628 = vrot.lane.b32.xlu0 %v76, 48
    %v629 = vpop.permute.xlu0 %628
    %v632 = vsel %vm82, %v627, 0
    %634 = vmatpush.msra.mxu0 0.0
    %635 = vmatpush.msra.mxu0 0.0
    %636 = vmatpush.msra.mxu0 0.0
    %637 = vmatpush.msra.mxu0 0.0
    %638 = vmatpush.msra.mxu0 0.0
    %639 = vmatpush.msra.mxu0 0.0
    %640 = vmatpush.msra.mxu0 0.0
    %641 = vmatpush.msra.mxu0 0.0
    %642 = vmatpush.msra.mxu0 0.0
    %643 = vmatpush.msra.mxu0 0.0
    %644 = vmatpush.msra.mxu0 0.0
    %645 = vmatpush.msra.mxu0 0.0
    %646 = vmatpush.msra.mxu0 0.0
    %647 = vmatpush.msra.mxu0 0.0
    %648 = vmatpush.msra.mxu0 0.0
    %649 = vmatpush.msra.mxu0 %v629
    %650 = vmatmul.f32.gmra.mxu0 %v632
    %v651 = vpop.f32.mrf.mxu0
    %v652 = vadd.f32 0.0, %v651
    %653 = vdwg.mxu0
    %654 = vrot.lane.b32.xlu0 %v76, 104
    %v655 = vpop.permute.xlu0 %654
    %656 = vrot.lane.b32.xlu0 %v76, 72
    %v657 = vpop.permute.xlu0 %656
    %v658 = vsel %vm82, %v655, 0
    %v660 = vsel %vm82, %v657, 0
    %662 = vmatpush.xpose.msra.mxu0 0.0
    %663 = vmatpush.xpose.msra.mxu0 0.0
    %664 = vmatpush.xpose.msra.mxu0 0.0
    %665 = vmatpush.xpose.msra.mxu0 0.0
    %666 = vmatpush.xpose.msra.mxu0 0.0
    %667 = vmatpush.xpose.msra.mxu0 0.0
    %668 = vmatpush.xpose.msra.mxu0 0.0
    %669 = vmatpush.xpose.msra.mxu0 0.0
    %670 = vmatpush.xpose.msra.mxu0 0.0
    %671 = vmatpush.xpose.msra.mxu0 0.0
    %672 = vmatpush.xpose.msra.mxu0 0.0
    %673 = vmatpush.xpose.msra.mxu0 0.0
    %674 = vmatpush.xpose.msra.mxu0 0.0
    %675 = vmatpush.xpose.msra.mxu0 0.0
    %676 = vmatpush.xpose.msra.mxu0 0.0
    %677 = vmatpush.xpose.msra.mxu0 %v660
    %678 = vmatmul.f32.gmra.mxu0 %v658
    %v679 = vpop.f32.mrf.mxu0
    %v680 = vadd.f32 %v420, %v679
    %681 = vdwg.mxu0
    %v682 = vsel %vm82, %v680, -inf
    %683 = vmax.xlane.f32.xlu0 %v682
    %v684 = vpop.xlane.xlu0 %683
    %v685 = vsub.f32 %v680, %v684
    %v686 = vmul.f32 %v685, 1.442695
    %v687 = vpow.pop %v686
    %v688 = vsel %vm82, %v687, 0.0
    %689 = vadd.xlane.f32.xlu0 %v688
    %v690 = vpop.xlane.xlu0 %689
    %v691 = vrcp.pop %v690
    %v692 = vmul.f32 %v690, %v691
    %v693 = vsub.f32 1.0, %v692
    %v694 = vmul.f32 %v691, %v693
    %v695 = vadd.f32 %v691, %v694
    %vm696 = vweird.f32 %v690
    %vm697 = vweird.f32 %v691
    %vm698 = vmor %vm696, %vm697
    %v699 = vsel %vm698, %v691, %v695
    %v700 = vand.u32 2147483647, %v690
    %vm701 = vcmp.eq.f32.partialorder %v700, 8.507059e+37
    %v702 = vand.u32 %v690, 2147483648
    %v703 = vor.u32 1.1754944e-38, %v702
    %v704 = vsel %vm701, %v703, %v699
    %v705 = vmul.f32 %v687, %v704
    %706 = vrot.lane.b32.xlu0 %v76, 40
    %v707 = vpop.permute.xlu0 %706
    %v710 = vsel %vm82, %v705, 0
    %712 = vmatpush.msra.mxu0 0.0
    %713 = vmatpush.msra.mxu0 0.0
    %714 = vmatpush.msra.mxu0 0.0
    %715 = vmatpush.msra.mxu0 0.0
    %716 = vmatpush.msra.mxu0 0.0
    %717 = vmatpush.msra.mxu0 0.0
    %718 = vmatpush.msra.mxu0 0.0
    %719 = vmatpush.msra.mxu0 0.0
    %720 = vmatpush.msra.mxu0 0.0
    %721 = vmatpush.msra.mxu0 0.0
    %722 = vmatpush.msra.mxu0 0.0
    %723 = vmatpush.msra.mxu0 0.0
    %724 = vmatpush.msra.mxu0 0.0
    %725 = vmatpush.msra.mxu0 0.0
    %726 = vmatpush.msra.mxu0 0.0
    %727 = vmatpush.msra.mxu0 %v707
    %728 = vmatmul.f32.gmra.mxu0 %v710
    %v729 = vpop.f32.mrf.mxu0
    %v730 = vadd.f32 0.0, %v729
    %731 = vdwg.mxu0
    %733 = vrot.lane.b32.xlu0 %v574, 8
    %v734 = vpop.permute.xlu0 %733
    %737 = vrot.lane.b32.xlu0 %v652, 16
    %v738 = vpop.permute.xlu0 %737
    %741 = vrot.lane.b32.xlu0 %v730, 24
    %v742 = vpop.permute.xlu0 %741
    %v744 = vsel %vm82, %v496, %v734
    %v745 = vsel %vm404, %v744, %v738
    %v746 = vsel %vm406, %v745, %v742
    %747 = vrot.lane.b32.xlu0 %v549, 8
    %v748 = vpop.permute.xlu0 %747
    %750 = vrot.lane.b32.xlu0 %v627, 16
    %v751 = vpop.permute.xlu0 %750
    %753 = vrot.lane.b32.xlu0 %v705, 24
    %v754 = vpop.permute.xlu0 %753
    %v756 = vsel %vm82, %v471, %v748
    %v757 = vsel %vm404, %v756, %v751
    %v758 = vsel %vm406, %v757, %v754
    %763 = vrot.lane.b32.xlu0 %v26, 32
    %v764 = vpop.permute.xlu0 %763
    %765 = vrot.lane.b32.xlu0 %v27, 32
    %v766 = vpop.permute.xlu0 %765
    %767 = vrot.lane.b32.xlu0 %v28, 32
    %v768 = vpop.permute.xlu0 %767
    %769 = vrot.lane.b32.xlu0 %v29, 32
    %v770 = vpop.permute.xlu0 %769
    %775 = vrot.lane.b32.xlu0 %v46, 32
    %v776 = vpop.permute.xlu0 %775
    %v779 = vsel %vm48, %v407, 0
    %v782 = vsel %vm48, %v746, 0
    %784 = vmatpush.msra.mxu0 0.0
    %785 = vmatpush.msra.mxu0 0.0
    %786 = vmatpush.msra.mxu0 0.0
    %787 = vmatpush.msra.mxu0 0.0
    %788 = vmatpush.msra.mxu0 0.0
    %789 = vmatpush.msra.mxu0 0.0
    %790 = vmatpush.msra.mxu0 0.0
    %791 = vmatpush.msra.mxu0 0.0
    %792 = vmatpush.msra.mxu0 0.0
    %793 = vmatpush.msra.mxu0 0.0
    %794 = vmatpush.msra.mxu0 0.0
    %795 = vmatpush.msra.mxu0 0.0
    %796 = vmatpush.msra.mxu0 %v770
    %797 = vmatpush.msra.mxu0 %v768
    %798 = vmatpush.msra.mxu0 %v766
    %799 = vmatpush.msra.mxu0 %v764
    %800 = vmatmul.f32.gmra.mxu0 %v779
    %v801 = vpop.f32.mrf.mxu0
    %v802 = vadd.f32 %v776, %v801
    %803 = vmatmul.f32.gmra.mxu0 %v782
    %v804 = vpop.f32.mrf.mxu0
    %v805 = vadd.f32 %v776, %v804
    %806 = vdwg.mxu0
    %v807 = vadd.f32 %v802, %v24
    %v808 = vadd.f32 %v805, %v25
    %v809 = vsel %vm48, %v807, 0.0
    %810 = vadd.xlane.f32.xlu0 %v809
    %v811 = vpop.xlane.xlu0 %810
    %v812 = vsel %vm48, %v808, 0.0
    %813 = vadd.xlane.f32.xlu0 %v812
    %v814 = vpop.xlane.xlu0 %813
    %v815 = vrcp.pop 32.0
    %v816 = vmul.f32 32.0, %v815
    %v817 = vsub.f32 1.0, %v816
    %v818 = vmul.f32 %v815, %v817
    %v819 = vadd.f32 %v815, %v818
    %vm820 = vweird.f32 %v815
    %v821 = vsel %vm820, %v815, %v819
    %v822 = vmul.f32 %v811, %v821
    %v823 = vmul.f32 %v814, %v821
    %v824 = vsub.f32 %v807, %v822
    %v825 = vsub.f32 %v808, %v823
    %v826 = vmul.f32 %v824, %v824
    %v827 = vmul.f32 %v825, %v825
    %v828 = vsel %vm48, %v826, 0.0
    %829 = vadd.xlane.f32.xlu0 %v828
    %v830 = vpop.xlane.xlu0 %829
    %v831 = vsel %vm48, %v827, 0.0
    %832 = vadd.xlane.f32.xlu0 %v831
    %v833 = vpop.xlane.xlu0 %832
    %v834 = vmul.f32 %v830, %v821
    %v835 = vmul.f32 %v833, %v821
    %v836 = vadd.f32 %v834, 1e-05
    %v837 = vadd.f32 %v835, 1e-05
    %v838 = vrsqrt.pop %v836
    %v839 = vmul.f32 %v838, %v836
    %v840 = vmul.f32 %v839, %v838
    %v841 = vmul.f32 0.5, %v840
    %v842 = vsub.f32 1.5, %v841
    %v843 = vmul.f32 %v838, %v842
    %vm844 = vweird.f32 %v836
    %vm845 = vweird.f32 %v838
    %vm846 = vmor %vm844, %vm845
    %v847 = vsel %vm846, %v838, %v843
    %v848 = vrsqrt.pop %v837
    %v849 = vmul.f32 %v848, %v837
    %v850 = vmul.f32 %v849, %v848
    %v851 = vmul.f32 0.5, %v850
    %v852 = vsub.f32 1.5, %v851
    %v853 = vmul.f32 %v848, %v852
    %vm854 = vweird.f32 %v837
    %vm855 = vweird.f32 %v848
    %vm856 = vmor %vm854, %vm855
    %v857 = vsel %vm856, %v848, %v853
    %v858 = vmul.f32 %v824, %v847
    %v859 = vmul.f32 %v825, %v857
    %v861 = vperm.slane %v43, 0
    %v863 = vmul.f32 %v858, %v861
    %v864 = vmul.f32 %v859, %v861
    %865 = vrot.lane.b32.xlu0 %v861, 96
    %v866 = vpop.permute.xlu0 %865
    %v868 = vadd.f32 %v863, %v866
    %v869 = vadd.f32 %v864, %v866
    %870 = vrot.lane.b32.xlu0 %v861, 64
    %v871 = vpop.permute.xlu0 %870
    %v874 = vsel %vm48, %v868, 0
    %v877 = vsel %vm48, %v869, 0
    %879 = vmatpush.msra.mxu0 0.0
    %880 = vmatpush.msra.mxu0 0.0
    %881 = vmatpush.msra.mxu0 0.0
    %882 = vmatpush.msra.mxu0 0.0
    %883 = vmatpush.msra.mxu0 0.0
    %884 = vmatpush.msra.mxu0 0.0
    %885 = vmatpush.msra.mxu0 0.0
    %886 = vmatpush.msra.mxu0 0.0
    %887 = vmatpush.msra.mxu0 0.0
    %888 = vmatpush.msra.mxu0 0.0
    %889 = vmatpush.msra.mxu0 0.0
    %890 = vmatpush.msra.mxu0 0.0
    %891 = vmatpush.msra.mxu0 %v33
    %892 = vmatpush.msra.mxu0 %v32
    %893 = vmatpush.msra.mxu0 %v31
    %894 = vmatpush.msra.mxu0 %v30
    %895 = vmatmul.f32.gmra.mxu0 %v874
    %v896 = vpop.f32.mrf.mxu0
    %v897 = vadd.f32 %v871, %v896
    %898 = vmatmul.f32.gmra.mxu0 %v877
    %v899 = vpop.f32.mrf.mxu0
    %v900 = vadd.f32 %v871, %v899
    %901 = vdwg.mxu0
    %v902 = vmax.f32 %v897, 0.0
    %v903 = vmax.f32 %v900, 0.0
    %v905 = vperm.slane %v44, 0
    %vm907 = vcmask 523264
    %v909 = vsel %vm907, %v902, 0
    %v912 = vsel %vm907, %v903, 0
    %914 = vmatpush.msra.mxu0 0.0
    %915 = vmatpush.msra.mxu0 0.0
    %916 = vmatpush.msra.mxu0 0.0
    %917 = vmatpush.msra.mxu0 0.0
    %918 = vmatpush.msra.mxu0 0.0
    %919 = vmatpush.msra.mxu0 0.0
    %920 = vmatpush.msra.mxu0 0.0
    %921 = vmatpush.msra.mxu0 0.0
    %922 = vmatpush.msra.mxu0 %v41
    %923 = vmatpush.msra.mxu0 %v40
    %924 = vmatpush.msra.mxu0 %v39
    %925 = vmatpush.msra.mxu0 %v38
    %926 = vmatpush.msra.mxu0 %v37
    %927 = vmatpush.msra.mxu0 %v36
    %928 = vmatpush.msra.mxu0 %v35
    %929 = vmatpush.msra.mxu0 %v34
    %930 = vmatmul.f32.gmra.mxu0 %v909
    %v931 = vpop.f32.mrf.mxu0
    %v932 = vadd.f32 %v905, %v931
    %933 = vmatmul.f32.gmra.mxu0 %v912
    %v934 = vpop.f32.mrf.mxu0
    %v935 = vadd.f32 %v905, %v934
    %936 = vdwg.mxu0
    %v937 = vadd.f32 %v932, %v868
    %v938 = vadd.f32 %v935, %v869
    %v939 = vsel %vm48, %v937, 0.0
    %940 = vadd.xlane.f32.xlu0 %v939
    %v941 = vpop.xlane.xlu0 %940
    %v942 = vsel %vm48, %v938, 0.0
    %943 = vadd.xlane.f32.xlu0 %v942
    %v944 = vpop.xlane.xlu0 %943
    %v945 = vmul.f32 %v941, %v821
    %v946 = vmul.f32 %v944, %v821
    %v947 = vsub.f32 %v937, %v945
    %v948 = vsub.f32 %v938, %v946
    %v949 = vmul.f32 %v947, %v947
    %v950 = vmul.f32 %v948, %v948
    %v951 = vsel %vm48, %v949, 0.0
    %952 = vadd.xlane.f32.xlu0 %v951
    %v953 = vpop.xlane.xlu0 %952
    %v954 = vsel %vm48, %v950, 0.0
    %955 = vadd.xlane.f32.xlu0 %v954
    %v956 = vpop.xlane.xlu0 %955
    %v957 = vmul.f32 %v953, %v821
    %v958 = vmul.f32 %v956, %v821
    %v959 = vadd.f32 %v957, 1e-05
    %v960 = vadd.f32 %v958, 1e-05
    %v961 = vrsqrt.pop %v959
    %v962 = vmul.f32 %v961, %v959
    %v963 = vmul.f32 %v962, %v961
    %v964 = vmul.f32 0.5, %v963
    %v965 = vsub.f32 1.5, %v964
    %v966 = vmul.f32 %v961, %v965
    %vm967 = vweird.f32 %v959
    %vm968 = vweird.f32 %v961
    %vm969 = vmor %vm967, %vm968
    %v970 = vsel %vm969, %v961, %v966
    %v971 = vrsqrt.pop %v960
    %v972 = vmul.f32 %v971, %v960
    %v973 = vmul.f32 %v972, %v971
    %v974 = vmul.f32 0.5, %v973
    %v975 = vsub.f32 1.5, %v974
    %v976 = vmul.f32 %v971, %v975
    %vm977 = vweird.f32 %v960
    %vm978 = vweird.f32 %v971
    %vm979 = vmor %vm977, %vm978
    %v980 = vsel %vm979, %v971, %v976
    %v981 = vmul.f32 %v947, %v970
    %v982 = vmul.f32 %v948, %v980
    %983 = vrot.lane.b32.xlu0 %v905, 96
    %v984 = vpop.permute.xlu0 %983
    %v986 = vmul.f32 %v981, %v984
    %v987 = vmul.f32 %v982, %v984
    %988 = vrot.lane.b32.xlu0 %v905, 64
    %v989 = vpop.permute.xlu0 %988
    %v991 = vadd.f32 %v986, %v989
    %v992 = vadd.f32 %v987, %v989
    %993 = vst.msk [vmem:[#allocation2] sm:$0xff] %vm48, %v991
    %994 = vst.msk [vmem:[#allocation2 + $0x8] sm:$0xff] %vm48, %v992
    %995 = vst.msk [vmem:[#allocation4] sm:$0xff] %vm48, %v419
    %996 = vst.msk [vmem:[#allocation4 + $0x8] sm:$0xff] %vm48, %v758
    // Predicated region
    $region22: #{tpu_custom_call.1} parent=1 // pred_check
      _
    $region23: #{tpu_custom_call.1} parent=1 // pred_check_branch
      %998 = sbr.rel (0) target = $region25
    $region24: #{tpu_custom_call.1} parent=1 // pred_region
      %1000 = vsyncadd [#allocation3], 0
      %s1001 = sshll.u32 [#allocation2], 4
      %s1002 = int_to_ptr.vmem [resolvable:$true] %s1001
      %s1003 = sshll.u32 %s5, 4
      %s1004 = int_to_ptr.hbm [resolvable:$true] %s1003
      %1009 = dma.vmem_to_hbm [thread:$0]  %s1002, 256, %s1004, [#allocation3], 128, 128, 8
    $region25: #{tpu_custom_call.1} parent=1 // pred_fallthru
      _
    // Predicated region
    $region26: #{tpu_custom_call.1} parent=1 // pred_check
      _
    $region27: #{tpu_custom_call.1} parent=1 // pred_check_branch
      %1011 = sbr.rel (0) target = $region29
    $region28: #{tpu_custom_call.1} parent=1 // pred_region
      %1013 = vsyncadd [#allocation5], 0
      %s1014 = sshll.u32 [#allocation4], 4
      %s1015 = int_to_ptr.vmem [resolvable:$true] %s1014
      %s1016 = sshll.u32 %s6, 4
      %s1017 = int_to_ptr.hbm [resolvable:$true] %s1016
      %1022 = dma.vmem_to_hbm [thread:$0]  %s1015, 256, %s1017, [#allocation5], 128, 128, 8
    $region29: #{tpu_custom_call.1} parent=1 // pred_fallthru
      _
    // Predicated region
    $region30: #{tpu_custom_call.1} parent=1 // pred_check
      _
    $region31: #{tpu_custom_call.1} parent=1 // pred_check_branch
      %1024 = sbr.rel (0) target = $region33
    $region32: #{tpu_custom_call.1} parent=1 // pred_region
      %1026 = dma.done [#allocation3], 256
    $region33: #{tpu_custom_call.1} parent=1 // pred_fallthru
      _
    // Predicated region
    $region34: #{tpu_custom_call.1} parent=1 // pred_check
      _
    $region35: #{tpu_custom_call.1} parent=1 // pred_check_branch
      %1028 = sbr.rel (0) target = $region37
    $region36: #{tpu_custom_call.1} parent=1 // pred_region
      %1030 = dma.done [#allocation5], 256
    $region37: #{tpu_custom_call.1} parent=1 // pred_fallthru
      _
    %1031 = vsyncpa [#allocation3], 1
    %1032 = vsyncpa [#allocation5], 1

</llo_original>
